<compile_context>
chip_gen: v7x
topology: tpu7x:2x2x1
jax: 0.10.0
libtpu: 0.0.40
codegen_flags: <defaults>
</compile_context>

<pallas_src>
import functools
import math

import jax
import jax.numpy as jnp
from jax.experimental import pallas as pl
from jax.experimental.pallas import tpu as pltpu


_SUBLANE = 16          # bf16 sublane packing; keeps in-kernel leading-dim merges free
_VMEM_LIMIT = None


def _round_up(x, m):
    return ((x + m - 1) // m) * m


def _vmem_limit_bytes():
    """Per-chip VMEM scoped limit (~75% of physical, capped at 96 MiB)."""
    global _VMEM_LIMIT
    if _VMEM_LIMIT is None:
        try:
            cap = int(pltpu.get_tpu_info().vmem_capacity_bytes)
        except Exception:
            cap = 64 * 1024 * 1024                 # assume smallest (v7x) if query fails
        _VMEM_LIMIT = max(32 * 1024 * 1024, min(96 * 1024 * 1024, (3 * cap) // 4))
    return _VMEM_LIMIT


def _default_tiles():
    """(SA centers per step, MLP rows per step); bigger tiles on 128 MiB-VMEM chips."""
    if _vmem_limit_bytes() >= 80 * 1024 * 1024:    # v5e / v6e
        return 512, 2048
    return 256, 1024                               # v7x (64 MiB VMEM)


def _pick_tile(n, tile):
    """Sublane-aligned tile <= tile; split in two when a level would be 1 grid step."""
    tile = min(tile, _round_up(n, _SUBLANE))
    if _SUBLANE < n < 2 * tile:
        tile = _round_up(-(-n // 2), _SUBLANE)     # ceil(n/2), 16-aligned -> >=2 steps
    return max(tile, _SUBLANE)


# ---------------------------------------------------------------------------
# Pallas kernels
# ---------------------------------------------------------------------------
def _sa_conv_kernel(edge_ref, wa_ref, ba_ref, w2_ref, out_ref, *, hp):
    """Per-edge fused ResMLP+ReLU, max aggregation over the k neighbors.

    edge_ref : (k, tile_m, Cin) bf16  neighbor-major edge features
    wa_ref   : (Cin, Hp+Op)     bf16  [W1 | Wsc] fused first-layer + shortcut weights
    ba_ref   : (1, Hp+Op)       f32   [b1 | b2+bsc]
    w2_ref   : (Hp, Op)         bf16  second-layer weights (zero padded)
    out_ref  : (tile_m, Op)     f32
    """
    k, tm, cin = edge_ref.shape
    w2 = w2_ref[...]
    # Single tall first GEMM over all k neighbors (layout-free merge: tm % 16 == 0).
    e_all = edge_ref[...].reshape(k * tm, cin)
    a = jnp.dot(e_all, wa_ref[...], preferred_element_type=jnp.float32) + ba_ref[...]
    acc = None
    for j in range(k):                             # static unroll: 2nd GEMM + max-agg
        aj = a[j * tm:(j + 1) * tm, :]
        h = jnp.maximum(aj[:, :hp], 0.0).astype(jnp.bfloat16)
        y = jnp.dot(h, w2, preferred_element_type=jnp.float32) + aj[:, hp:]
        y = jnp.maximum(y, 0.0)                    # outer ReLU of Sequential(ResMLP, ReLU)
        acc = y if acc is None else jnp.maximum(acc, y)   # VPU max aggregation
    out_ref[...] = acc


def _resmlp_kernel(x_ref, wa_ref, ba_ref, w2_ref, out_ref, *, hp, relu_out):
    """Fused ResMLP (optionally + outer ReLU) on a (tile_rows, Cin) slab."""
    a = jnp.dot(x_ref[...], wa_ref[...], preferred_element_type=jnp.float32) + ba_ref[...]
    h = jnp.maximum(a[:, :hp], 0.0).astype(jnp.bfloat16)
    y = jnp.dot(h, w2_ref[...], preferred_element_type=jnp.float32) + a[:, hp:]
    if relu_out:
        y = jnp.maximum(y, 0.0)
    out_ref[...] = y


def _resmlp2_kernel(x1_ref, x2_ref, wa1_ref, wa2_ref, ba_ref, w2_ref, out_ref, *,
                    hp, relu_out):
    """Fused ResMLP on the virtual concat [x1 | x2] without materializing it."""
    a = (jnp.dot(x1_ref[...], wa1_ref[...], preferred_element_type=jnp.float32)
         + jnp.dot(x2_ref[...], wa2_ref[...], preferred_element_type=jnp.float32)
         + ba_ref[...])
    h = jnp.maximum(a[:, :hp], 0.0).astype(jnp.bfloat16)
    y = jnp.dot(h, w2_ref[...], preferred_element_type=jnp.float32) + a[:, hp:]
    if relu_out:
        y = jnp.maximum(y, 0.0)
    out_ref[...] = y


# ---------------------------------------------------------------------------
# Kernel wrappers
# ---------------------------------------------------------------------------
def pointnet_conv(edge, prepped, *, tile_m, n_valid):
    """edge: (B, k, M_pad, Cin) bf16 neighbor-major -> (B*n_valid, out_channels)."""
    B, k_eff, m_pad, cin = edge.shape
    hp = prepped["hp"]
    op = prepped["w2"].shape[1]
    o = prepped["out_channels"]
    edge = edge.astype(jnp.bfloat16)

    out = pl.pallas_call(
        functools.partial(_sa_conv_kernel, hp=hp),
        out_shape=jax.ShapeDtypeStruct((B, m_pad, op), jnp.float32),
        grid=(B, m_pad // tile_m),
        in_specs=[
            pl.BlockSpec((None, k_eff, tile_m, cin), lambda b, i: (b, 0, i, 0)),
            pl.BlockSpec(prepped["wa"].shape, lambda b, i: (0, 0)),   # resident weights
            pl.BlockSpec(prepped["ba"].shape, lambda b, i: (0, 0)),
            pl.BlockSpec(prepped["w2"].shape, lambda b, i: (0, 0)),
        ],
        out_specs=pl.BlockSpec((None, tile_m, op), lambda b, i: (b, i, 0)),
        compiler_params=pltpu.CompilerParams(
            dimension_semantics=("parallel", "parallel"),
            vmem_limit_bytes=_vmem_limit_bytes(),
        ),
    )(edge, prepped["wa"], prepped["ba"], prepped["w2"])
    return out[:, :n_valid, :o].reshape(B * n_valid, o)


def fused_mlp(x, prepped, *, relu_out, tile_rows=None):
    """x: (N, Cin) -> (N, out_channels) through a fused (Res)MLP."""
    n, cin = x.shape
    hp = prepped["hp"]
    op = prepped["w2"].shape[1]
    o = prepped["out_channels"]
    if tile_rows is None:
        tile_rows = _default_tiles()[1]
    tile_rows = _pick_tile(n, tile_rows)
    n_pad = _round_up(n, tile_rows)

    xb = x.astype(jnp.bfloat16)                    # pad fuses with the bf16 cast pass
    if n_pad != n:
        xb = jnp.pad(xb, ((0, n_pad - n), (0, 0)))

    out = pl.pallas_call(
        functools.partial(_resmlp_kernel, hp=hp, relu_out=relu_out),
        out_shape=jax.ShapeDtypeStruct((n_pad, op), jnp.float32),
        grid=(n_pad // tile_rows,),
        in_specs=[
            pl.BlockSpec((tile_rows, cin), lambda i: (i, 0)),
            pl.BlockSpec(prepped["wa"].shape, lambda i: (0, 0)),
            pl.BlockSpec(prepped["ba"].shape, lambda i: (0, 0)),
            pl.BlockSpec(prepped["w2"].shape, lambda i: (0, 0)),
        ],
        out_specs=pl.BlockSpec((tile_rows, op), lambda i: (i, 0)),  # lane-dense (Op%128==0)
        compiler_params=pltpu.CompilerParams(
            dimension_semantics=("parallel",),
            vmem_limit_bytes=_vmem_limit_bytes(),
        ),
    )(xb, prepped["wa"], prepped["ba"], prepped["w2"])
    return out[:n, :o]


def fused_mlp2(x1, x2, prepped, *, relu_out, tile_rows=None):
    """Fused ResMLP over the virtual concat [x1 | x2] (no HBM concat)."""
    n, c1 = x1.shape
    _, c2 = x2.shape
    hp = prepped["hp"]
    op = prepped["w2"].shape[1]
    o = prepped["out_channels"]
    wa = prepped["wa"]
    wa1, wa2 = wa[:c1], wa[c1:c1 + c2]             # tiny row-block split of the weights
    if tile_rows is None:
        tile_rows = _default_tiles()[1]
    tile_rows = _pick_tile(n, tile_rows)
    n_pad = _round_up(n, tile_rows)

    x1b = x1.astype(jnp.bfloat16)
    x2b = x2.astype(jnp.bfloat16)
    if n_pad != n:
        pad = ((0, n_pad - n), (0, 0))
        x1b = jnp.pad(x1b, pad)
        x2b = jnp.pad(x2b, pad)

    out = pl.pallas_call(
        functools.partial(_resmlp2_kernel, hp=hp, relu_out=relu_out),
        out_shape=jax.ShapeDtypeStruct((n_pad, op), jnp.float32),
        grid=(n_pad // tile_rows,),
        in_specs=[
            pl.BlockSpec((tile_rows, c1), lambda i: (i, 0)),
            pl.BlockSpec((tile_rows, c2), lambda i: (i, 0)),
            pl.BlockSpec(wa1.shape, lambda i: (0, 0)),
            pl.BlockSpec(wa2.shape, lambda i: (0, 0)),
            pl.BlockSpec(prepped["ba"].shape, lambda i: (0, 0)),
            pl.BlockSpec(prepped["w2"].shape, lambda i: (0, 0)),
        ],
        out_specs=pl.BlockSpec((tile_rows, op), lambda i: (i, 0)),
        compiler_params=pltpu.CompilerParams(
            dimension_semantics=("parallel",),
            vmem_limit_bytes=_vmem_limit_bytes(),
        ),
    )(x1b, x2b, wa1, wa2, prepped["ba"], prepped["w2"])
    return out[:n, :o]


# ---------------------------------------------------------------------------
# Plain-JAX glue: FPS, kNN, gather, knn_interpolate (data-dependent indexing)
# Batches are assumed contiguous and equal sized; B is passed statically.
# ---------------------------------------------------------------------------
def fps_batched(pos_b, n_sample):
    """Deterministic farthest point sampling (start = point 0)."""
    B, Nb, _ = pos_b.shape
    sel0 = jnp.zeros((B, n_sample), jnp.int32)
    d0 = jnp.sum((pos_b - pos_b[:, 0:1, :]) ** 2, axis=-1)

    def step(i, state):
        sel, mind = state
        nxt = jnp.argmax(mind, axis=-1).astype(jnp.int32)
        sel = sel.at[:, i].set(nxt)
        new_pt = jnp.take_along_axis(pos_b, nxt[:, None, None], axis=1)
        mind = jnp.minimum(mind, jnp.sum((pos_b - new_pt) ** 2, axis=-1))
        return sel, mind

    sel, _ = jax.lax.fori_loop(1, n_sample, step, (sel0, d0))
    return sel


def knn_batched(pos_b, sel, k):
    centers = jnp.take_along_axis(pos_b, sel[..., None], axis=1)            # (B, M, 3)
    d = jnp.sum((centers[:, :, None, :] - pos_b[:, None, :, :]) ** 2, -1)   # (B, M, Nb)
    _, nbr = jax.lax.top_k(-d, k)
    return nbr.astype(jnp.int32)


def build_sa_graph(x, pos, B, n_sample, k_eff, m_pad):
    """Neighbor-major edge features for one SA level.

    Returns edge (B, k_eff, m_pad, Cin) bf16 and centers (B, m_pad, 3) f32.
    Padding (m_pad > n_sample) is applied to the tiny index arrays before the gather,
    so the big edge tensor is written directly at its padded size (no jnp.pad pass).
    """
    N = pos.shape[0]
    Nb = N // B
    pos_b = pos.reshape(B, Nb, 3)

    sel = fps_batched(pos_b, n_sample)                                      # (B, M)
    nbr = knn_batched(pos_b, sel, k_eff)                                    # (B, M, k)
    if m_pad != n_sample:
        sel = jnp.pad(sel, ((0, 0), (0, m_pad - n_sample)))                 # idx 0 = valid
        nbr = jnp.pad(nbr, ((0, 0), (0, m_pad - n_sample), (0, 0)))

    centers = jnp.take_along_axis(pos_b, sel[..., None], axis=1)            # (B, Mp, 3) f32
    nbr_t = jnp.swapaxes(nbr, 1, 2)                                         # (B, k, Mp) tiny
    nbr_flat = nbr_t.reshape(B, k_eff * m_pad)
    nbr_pos = jnp.take_along_axis(pos_b, nbr_flat[..., None], axis=1)
    nbr_pos = nbr_pos.reshape(B, k_eff, m_pad, 3)
    rel = (nbr_pos - centers[:, None, :, :]).astype(jnp.bfloat16)           # pos_j - pos_i

    if x is None:
        edge = rel
    else:
        C = x.shape[1]
        x_b = x.reshape(B, Nb, C).astype(jnp.bfloat16)                      # bf16 gather
        nbr_x = jnp.take_along_axis(x_b, nbr_flat[..., None], axis=1)
        nbr_x = nbr_x.reshape(B, k_eff, m_pad, C)
        edge = jnp.concatenate([nbr_x, rel], axis=-1)                       # [x_j, rel]
    return edge, centers


def knn_interpolate_batched(x_src, pos_src, pos_tgt, B, k=3):
    """PyG knn_interpolate: inverse squared-distance weighting over k NN."""
    Ns = pos_src.shape[0] // B
    Nt = pos_tgt.shape[0] // B
    C = x_src.shape[1]
    k_eff = min(k, Ns)

    ps = pos_src.reshape(B, Ns, 3)
    pt = pos_tgt.reshape(B, Nt, 3)
    xs = x_src.reshape(B, Ns, C)

    d = jnp.sum((pt[:, :, None, :] - ps[:, None, :, :]) ** 2, axis=-1)      # (B, Nt, Ns)
    neg_d, idx = jax.lax.top_k(-d, k_eff)
    w = 1.0 / jnp.maximum(-neg_d, 1e-16)                                    # (B, Nt, k)

    idx_flat = idx.reshape(B, Nt * k_eff)
    nx = jnp.take_along_axis(xs, idx_flat[..., None], axis=1)
    nx = nx.reshape(B, Nt, k_eff, C)
    y = jnp.sum(nx * w[..., None], axis=2) / jnp.sum(w, axis=2, keepdims=True)
    return y.reshape(B * Nt, C)


# ---------------------------------------------------------------------------
# Module pieces built from the kernels
# ---------------------------------------------------------------------------
def sa_module(x, pos, B, prepped, *, ratio, k, tile_m=None):
    N = pos.shape[0]
    Nb = N // B
    n_sample = math.ceil(ratio * Nb)
    k_eff = min(k, Nb)
    if tile_m is None:
        tile_m = _default_tiles()[0]
    tile_m = _pick_tile(n_sample, tile_m)
    m_pad = _round_up(n_sample, tile_m)

    edge, centers = build_sa_graph(x, pos, B, n_sample, k_eff, m_pad)
    x_out = pointnet_conv(edge, prepped, tile_m=tile_m, n_valid=n_sample)
    pos_out = centers[:, :n_sample].reshape(B * n_sample, 3)
    return x_out, pos_out, n_sample


def fp_module(x_target, pos_target, x_source, pos_source, prepped, B, *, k=3,
              tile_rows=None):
    interp = knn_interpolate_batched(x_source, pos_source, pos_target, B, k=k)
    if x_target is None:
        return fused_mlp(interp, prepped, relu_out=True, tile_rows=tile_rows)
    return fused_mlp2(x_target, interp, prepped, relu_out=True, tile_rows=tile_rows)


def interior_decoder_forward(z, c, query_pos, query_batch, B, prepped, *,
                             sa_tile_m=None, mlp_tile_rows=None):
    del query_batch  # batches are contiguous & equal sized; B is static

    x1, pos1, n1 = sa_module(None, query_pos, B, prepped["sa1"], ratio=0.25, k=16,
                             tile_m=sa_tile_m)
    x2, pos2, n2 = sa_module(x1, pos1, B, prepped["sa2"], ratio=0.25, k=16,
                             tile_m=sa_tile_m)
    x3, _pos3, n3 = sa_module(x2, pos2, B, prepped["sa3"], ratio=0.25, k=16,
                              tile_m=sa_tile_m)

    # Literal PyTorch forward: cat([x3, z[batch2], c[batch2]]) — only shape-consistent
    # when sa3 keeps one point per batch element (n3 == n2), as in this example.
    assert x3.shape[0] == B * n2, "x3 must align with batch2 (as in the original forward)"
    batch2 = jnp.repeat(jnp.arange(B, dtype=jnp.int32), n2)
    bott_in = jnp.concatenate([x3, z[batch2], c[batch2]], axis=1)           # tiny concat
    bott = fused_mlp(bott_in, prepped["bott"], relu_out=True, tile_rows=mlp_tile_rows)

    up_x2 = fp_module(x2, pos2, bott, pos2, prepped["fp1"], B, k=3, tile_rows=mlp_tile_rows)
    up_x1 = fp_module(x1, pos1, up_x2, pos2, prepped["fp2"], B, k=3, tile_rows=mlp_tile_rows)
    final_x = fp_module(None, query_pos, up_x1, pos1, prepped["fp3"], B, k=3,
                        tile_rows=mlp_tile_rows)

    return fused_mlp(final_x, prepped["final"], relu_out=False, tile_rows=mlp_tile_rows)


# ---------------------------------------------------------------------------
# Parameter init (mimics nn.Linear U(-1/sqrt(fan_in), +)) and weight prep
# ---------------------------------------------------------------------------
def init_linear(key, fan_in, fan_out):
    kw, kb = jax.random.split(key)
    bound = 1.0 / math.sqrt(fan_in)
    w = jax.random.uniform(kw, (fan_in, fan_out), jnp.float32, -bound, bound)
    b = jax.random.uniform(kb, (1, fan_out), jnp.float32, -bound, bound)
    return w, b


def init_resmlp(key, cin, hidden, out, shortcut):
    k1, k2, k3 = jax.random.split(key, 3)
    w1, b1 = init_linear(k1, cin, hidden)
    w2, b2 = init_linear(k2, hidden, out)
    if shortcut == "linear":
        wsc, bsc = init_linear(k3, cin, out)
    elif shortcut == "identity":          # ResMLP with in_channels == out_channels
        wsc = jnp.eye(cin, dtype=jnp.float32)
        bsc = jnp.zeros((1, out), jnp.float32)
    else:                                 # plain 2-layer MLP (final head)
        wsc = jnp.zeros((cin, out), jnp.float32)
        bsc = jnp.zeros((1, out), jnp.float32)
    return dict(w1=w1, b1=b1, w2=w2, b2=b2, wsc=wsc, bsc=bsc)


def prep_resmlp(raw):
    """Pad hidden/out channels to x128, fuse [W1|Wsc] (fold b2), cast weights to bf16."""
    w1, b1, w2, b2, wsc, bsc = (raw["w1"], raw["b1"], raw["w2"], raw["b2"],
                                raw["wsc"], raw["bsc"])
    cin, h = w1.shape
    o = w2.shape[1]
    hp = _round_up(h, 128)
    op = _round_up(o, 128)

    w1p = jnp.zeros((cin, hp), jnp.float32).at[:, :h].set(w1)
    wscp = jnp.zeros((cin, op), jnp.float32).at[:, :o].set(wsc)
    wa = jnp.concatenate([w1p, wscp], axis=1).astype(jnp.bfloat16)   # (Cin, Hp+Op)

    b1p = jnp.zeros((1, hp), jnp.float32).at[:, :h].set(b1)
    bscp = jnp.zeros((1, op), jnp.float32).at[:, :o].set(b2 + bsc)   # fold b2
    ba = jnp.concatenate([b1p, bscp], axis=1)                        # (1, Hp+Op) f32

    w2p = jnp.zeros((hp, op), jnp.float32).at[:h, :o].set(w2).astype(jnp.bfloat16)
    return dict(wa=wa, ba=ba, w2=w2p, hp=hp, out_channels=o)


# ---------------------------------------------------------------------------
# Pure-JAX reference with matched numerics (bf16 MXU operands, f32 accumulation)
# ---------------------------------------------------------------------------
def _bdot(a, b):
    return jnp.dot(a.astype(jnp.bfloat16), b.astype(jnp.bfloat16),
                   preferred_element_type=jnp.float32)


def resmlp_ref(x, p, relu_out):
    h = jnp.maximum(_bdot(x, p["w1"]) + p["b1"], 0.0)
    y = _bdot(h, p["w2"]) + p["b2"] + _bdot(x, p["wsc"]) + p["bsc"]
    return jnp.maximum(y, 0.0) if relu_out else y


def sa_module_ref(x, pos, B, raw_layer, *, ratio, k):
    N = pos.shape[0]
    Nb = N // B
    n_sample = math.ceil(ratio * Nb)
    k_eff = min(k, Nb)
    edge, centers = build_sa_graph(x, pos, B, n_sample, k_eff, n_sample)    # unpadded
    cin = edge.shape[-1]
    o = raw_layer["w2"].shape[1]
    y = resmlp_ref(edge.reshape(B * k_eff * n_sample, cin), raw_layer, relu_out=True)
    y = jnp.max(y.reshape(B, k_eff, n_sample, o), axis=1)
    return y.reshape(B * n_sample, o), centers.reshape(B * n_sample, 3), n_sample


def interior_decoder_ref(z, c, query_pos, B, raw):
    x1, pos1, n1 = sa_module_ref(None, query_pos, B, raw["sa1"], ratio=0.25, k=16)
    x2, pos2, n2 = sa_module_ref(x1, pos1, B, raw["sa2"], ratio=0.25, k=16)
    x3, _p3, n3 = sa_module_ref(x2, pos2, B, raw["sa3"], ratio=0.25, k=16)

    batch2 = jnp.repeat(jnp.arange(B, dtype=jnp.int32), n2)
    bott = resmlp_ref(jnp.concatenate([x3, z[batch2], c[batch2]], 1), raw["bott"], True)

    interp1 = knn_interpolate_batched(bott, pos2, pos2, B, 3)
    up_x2 = resmlp_ref(jnp.concatenate([x2, interp1], 1), raw["fp1"], True)
    interp2 = knn_interpolate_batched(up_x2, pos2, pos1, B, 3)
    up_x1 = resmlp_ref(jnp.concatenate([x1, interp2], 1), raw["fp2"], True)
    interp3 = knn_interpolate_batched(up_x1, pos1, query_pos, B, 3)
    final_x = resmlp_ref(interp3, raw["fp3"], True)
    return resmlp_ref(final_x, raw["final"], False)


# ---------------------------------------------------------------------------
if __name__ == "__main__":
    key = jax.random.PRNGKey(0)
    B = 2
    n_query = 16                           # points per batch element
    latent_dim, condition_dim, out_channels = 8, 8, 4

    keys = jax.random.split(key, 12)
    query_pos = jax.random.normal(keys[0], (B * n_query, 3), jnp.float32)
    query_batch = jnp.repeat(jnp.arange(B, dtype=jnp.int32), n_query)
    z = jax.random.normal(keys[1], (B, latent_dim), jnp.float32)
    c = jax.random.normal(keys[2], (B, condition_dim), jnp.float32)

    raw = {
        "sa1": init_resmlp(keys[3], 3, 3, 64, "linear"),            # SA_Module(0.25,16,None,[3,64])
        "sa2": init_resmlp(keys[4], 64 + 3, 64 + 3, 128, "linear"),
        "sa3": init_resmlp(keys[5], 128 + 3, 128 + 3, 256, "linear"),
        "bott": init_resmlp(keys[6], 256 + latent_dim + condition_dim, 512, 512, "linear"),
        "fp1": init_resmlp(keys[7], 512 + 128, 256, 256, "linear"),
        "fp2": init_resmlp(keys[8], 256 + 64, 128, 128, "linear"),
        "fp3": init_resmlp(keys[9], 128, 128, 128, "identity"),
        "final": init_resmlp(keys[10], 128, 128, out_channels, "none"),
    }
    prepped = {name: prep_resmlp(p) for name, p in raw.items()}

    out = interior_decoder_forward(z, c, query_pos, query_batch, B, prepped)
    jax.block_until_ready(out)

    # Reference uses the same bf16-operand / f32-accumulate numerics as the kernels.
    ref = interior_decoder_ref(z, c, query_pos, B, raw)
    assert out.shape == (B * n_query, out_channels)
    max_err = float(jnp.max(jnp.abs(out - ref)))
    assert jnp.allclose(out, ref, atol=5e-2, rtol=5e-2), f"max abs err {max_err}"

    print("KERNEL_OK")
</pallas_src>

<mosaic_0001>
module attributes {stable_mosaic.version = 11 : i64} {
  func.func @_sa_conv_kernel(%arg0: i32, %arg1: i32, %arg2: memref<1x16x16x3xbf16, #tpu.memory_space<vmem>>, %arg3: memref<3x256xbf16, #tpu.memory_space<vmem>>, %arg4: memref<1x256xf32, #tpu.memory_space<vmem>>, %arg5: memref<128x128xbf16, #tpu.memory_space<vmem>>, %arg6: memref<1x16x128xf32, #tpu.memory_space<vmem>>) attributes {dimension_semantics = [#tpu.dimension_semantics<parallel>, #tpu.dimension_semantics<parallel>], iteration_bounds = array<i64: 2, 1>, scalar_prefetch = 0 : i64, scratch_operands = 0 : i64, tpu.core_type = #tpu.core_type<tc>, window_params = [{transform_indices = @transform_0, window_bounds = array<i64: 1, 16, 16, 3>}, {pipeline_mode = #tpu.pipeline_mode<synchronous>, transform_indices = @transform_1, window_bounds = array<i64: 3, 256>}, {pipeline_mode = #tpu.pipeline_mode<synchronous>, transform_indices = @transform_2, window_bounds = array<i64: 1, 256>}, {pipeline_mode = #tpu.pipeline_mode<synchronous>, transform_indices = @transform_3, window_bounds = array<i64: 128, 128>}, {transform_indices = @transform_4, window_bounds = array<i64: 1, 16, 128>}]} {
    %c0 = arith.constant 0 : index
    %c0_0 = arith.constant 0 : index
    %0 = vector.load %arg5[%c0, %c0_0] : memref<128x128xbf16, #tpu.memory_space<vmem>>, vector<128x128xbf16>
    %c0_1 = arith.constant 0 : index
    %c0_2 = arith.constant 0 : index
    %c0_3 = arith.constant 0 : index
    %c0_4 = arith.constant 0 : index
    %1 = vector.load %arg2[%c0_1, %c0_2, %c0_3, %c0_4] : memref<1x16x16x3xbf16, #tpu.memory_space<vmem>>, vector<1x16x16x3xbf16>
    %2 = vector.shape_cast %1 : vector<1x16x16x3xbf16> to vector<16x16x3xbf16>
    %3 = vector.shape_cast %2 : vector<16x16x3xbf16> to vector<256x3xbf16>
    %c0_5 = arith.constant 0 : index
    %c0_6 = arith.constant 0 : index
    %4 = vector.load %arg3[%c0_5, %c0_6] : memref<3x256xbf16, #tpu.memory_space<vmem>>, vector<3x256xbf16>
    %cst = arith.constant dense<0.000000e+00> : vector<256x256xf32>
    %5 = tpu.matmul %3, %4, %cst {dimension_numbers = #tpu.dot_dimension_numbers<[1], [0], [0], [1], [0, 0, 1, 1], [], []>} : vector<256x3xbf16>, vector<3x256xbf16>, vector<256x256xf32> -> vector<256x256xf32>
    %c0_7 = arith.constant 0 : index
    %c0_8 = arith.constant 0 : index
    %6 = vector.load %arg4[%c0_7, %c0_8] : memref<1x256xf32, #tpu.memory_space<vmem>>, vector<1x256xf32>
    %7 = vector.broadcast %6 : vector<1x256xf32> to vector<256x256xf32>
    %8 = arith.addf %5, %7 : vector<256x256xf32>
    %9 = vector.extract_strided_slice %8 {offsets = [0, 0], sizes = [16, 256], strides = [1, 1]} : vector<256x256xf32> to vector<16x256xf32>
    %10 = vector.extract_strided_slice %9 {offsets = [0, 0], sizes = [16, 128], strides = [1, 1]} : vector<16x256xf32> to vector<16x128xf32>
    %cst_9 = arith.constant 0.000000e+00 : f32
    %11 = vector.broadcast %cst_9 : f32 to vector<16x128xf32>
    %12 = arith.maximumf %10, %11 : vector<16x128xf32>
    %13 = arith.truncf %12 : vector<16x128xf32> to vector<16x128xbf16>
    %cst_10 = arith.constant dense<0.000000e+00> : vector<16x128xf32>
    %14 = tpu.matmul %13, %0, %cst_10 {dimension_numbers = #tpu.dot_dimension_numbers<[1], [0], [0], [1], [0, 0, 1, 1], [], []>} : vector<16x128xbf16>, vector<128x128xbf16>, vector<16x128xf32> -> vector<16x128xf32>
    %15 = vector.extract_strided_slice %9 {offsets = [0, 128], sizes = [16, 128], strides = [1, 1]} : vector<16x256xf32> to vector<16x128xf32>
    %16 = arith.addf %14, %15 : vector<16x128xf32>
    %cst_11 = arith.constant 0.000000e+00 : f32
    %17 = vector.broadcast %cst_11 : f32 to vector<16x128xf32>
    %18 = arith.maximumf %16, %17 : vector<16x128xf32>
    %19 = vector.extract_strided_slice %8 {offsets = [16, 0], sizes = [16, 256], strides = [1, 1]} : vector<256x256xf32> to vector<16x256xf32>
    %20 = vector.extract_strided_slice %19 {offsets = [0, 0], sizes = [16, 128], strides = [1, 1]} : vector<16x256xf32> to vector<16x128xf32>
    %cst_12 = arith.constant 0.000000e+00 : f32
    %21 = vector.broadcast %cst_12 : f32 to vector<16x128xf32>
    %22 = arith.maximumf %20, %21 : vector<16x128xf32>
    %23 = arith.truncf %22 : vector<16x128xf32> to vector<16x128xbf16>
    %cst_13 = arith.constant dense<0.000000e+00> : vector<16x128xf32>
    %24 = tpu.matmul %23, %0, %cst_13 {dimension_numbers = #tpu.dot_dimension_numbers<[1], [0], [0], [1], [0, 0, 1, 1], [], []>} : vector<16x128xbf16>, vector<128x128xbf16>, vector<16x128xf32> -> vector<16x128xf32>
    %25 = vector.extract_strided_slice %19 {offsets = [0, 128], sizes = [16, 128], strides = [1, 1]} : vector<16x256xf32> to vector<16x128xf32>
    %26 = arith.addf %24, %25 : vector<16x128xf32>
    %cst_14 = arith.constant 0.000000e+00 : f32
    %27 = vector.broadcast %cst_14 : f32 to vector<16x128xf32>
    %28 = arith.maximumf %26, %27 : vector<16x128xf32>
    %29 = arith.maximumf %18, %28 : vector<16x128xf32>
    %30 = vector.extract_strided_slice %8 {offsets = [32, 0], sizes = [16, 256], strides = [1, 1]} : vector<256x256xf32> to vector<16x256xf32>
    %31 = vector.extract_strided_slice %30 {offsets = [0, 0], sizes = [16, 128], strides = [1, 1]} : vector<16x256xf32> to vector<16x128xf32>
    %cst_15 = arith.constant 0.000000e+00 : f32
    %32 = vector.broadcast %cst_15 : f32 to vector<16x128xf32>
    %33 = arith.maximumf %31, %32 : vector<16x128xf32>
    %34 = arith.truncf %33 : vector<16x128xf32> to vector<16x128xbf16>
    %cst_16 = arith.constant dense<0.000000e+00> : vector<16x128xf32>
    %35 = tpu.matmul %34, %0, %cst_16 {dimension_numbers = #tpu.dot_dimension_numbers<[1], [0], [0], [1], [0, 0, 1, 1], [], []>} : vector<16x128xbf16>, vector<128x128xbf16>, vector<16x128xf32> -> vector<16x128xf32>
    %36 = vector.extract_strided_slice %30 {offsets = [0, 128], sizes = [16, 128], strides = [1, 1]} : vector<16x256xf32> to vector<16x128xf32>
    %37 = arith.addf %35, %36 : vector<16x128xf32>
    %cst_17 = arith.constant 0.000000e+00 : f32
    %38 = vector.broadcast %cst_17 : f32 to vector<16x128xf32>
    %39 = arith.maximumf %37, %38 : vector<16x128xf32>
    %40 = arith.maximumf %29, %39 : vector<16x128xf32>
    %41 = vector.extract_strided_slice %8 {offsets = [48, 0], sizes = [16, 256], strides = [1, 1]} : vector<256x256xf32> to vector<16x256xf32>
    %42 = vector.extract_strided_slice %41 {offsets = [0, 0], sizes = [16, 128], strides = [1, 1]} : vector<16x256xf32> to vector<16x128xf32>
    %cst_18 = arith.constant 0.000000e+00 : f32
    %43 = vector.broadcast %cst_18 : f32 to vector<16x128xf32>
    %44 = arith.maximumf %42, %43 : vector<16x128xf32>
    %45 = arith.truncf %44 : vector<16x128xf32> to vector<16x128xbf16>
    %cst_19 = arith.constant dense<0.000000e+00> : vector<16x128xf32>
    %46 = tpu.matmul %45, %0, %cst_19 {dimension_numbers = #tpu.dot_dimension_numbers<[1], [0], [0], [1], [0, 0, 1, 1], [], []>} : vector<16x128xbf16>, vector<128x128xbf16>, vector<16x128xf32> -> vector<16x128xf32>
    %47 = vector.extract_strided_slice %41 {offsets = [0, 128], sizes = [16, 128], strides = [1, 1]} : vector<16x256xf32> to vector<16x128xf32>
    %48 = arith.addf %46, %47 : vector<16x128xf32>
    %cst_20 = arith.constant 0.000000e+00 : f32
    %49 = vector.broadcast %cst_20 : f32 to vector<16x128xf32>
    %50 = arith.maximumf %48, %49 : vector<16x128xf32>
    %51 = arith.maximumf %40, %50 : vector<16x128xf32>
    %52 = vector.extract_strided_slice %8 {offsets = [64, 0], sizes = [16, 256], strides = [1, 1]} : vector<256x256xf32> to vector<16x256xf32>
    %53 = vector.extract_strided_slice %52 {offsets = [0, 0], sizes = [16, 128], strides = [1, 1]} : vector<16x256xf32> to vector<16x128xf32>
    %cst_21 = arith.constant 0.000000e+00 : f32
    %54 = vector.broadcast %cst_21 : f32 to vector<16x128xf32>
    %55 = arith.maximumf %53, %54 : vector<16x128xf32>
    %56 = arith.truncf %55 : vector<16x128xf32> to vector<16x128xbf16>
    %cst_22 = arith.constant dense<0.000000e+00> : vector<16x128xf32>
    %57 = tpu.matmul %56, %0, %cst_22 {dimension_numbers = #tpu.dot_dimension_numbers<[1], [0], [0], [1], [0, 0, 1, 1], [], []>} : vector<16x128xbf16>, vector<128x128xbf16>, vector<16x128xf32> -> vector<16x128xf32>
    %58 = vector.extract_strided_slice %52 {offsets = [0, 128], sizes = [16, 128], strides = [1, 1]} : vector<16x256xf32> to vector<16x128xf32>
    %59 = arith.addf %57, %58 : vector<16x128xf32>
    %cst_23 = arith.constant 0.000000e+00 : f32
    %60 = vector.broadcast %cst_23 : f32 to vector<16x128xf32>
    %61 = arith.maximumf %59, %60 : vector<16x128xf32>
    %62 = arith.maximumf %51, %61 : vector<16x128xf32>
    %63 = vector.extract_strided_slice %8 {offsets = [80, 0], sizes = [16, 256], strides = [1, 1]} : vector<256x256xf32> to vector<16x256xf32>
    %64 = vector.extract_strided_slice %63 {offsets = [0, 0], sizes = [16, 128], strides = [1, 1]} : vector<16x256xf32> to vector<16x128xf32>
    %cst_24 = arith.constant 0.000000e+00 : f32
    %65 = vector.broadcast %cst_24 : f32 to vector<16x128xf32>
    %66 = arith.maximumf %64, %65 : vector<16x128xf32>
    %67 = arith.truncf %66 : vector<16x128xf32> to vector<16x128xbf16>
    %cst_25 = arith.constant dense<0.000000e+00> : vector<16x128xf32>
    %68 = tpu.matmul %67, %0, %cst_25 {dimension_numbers = #tpu.dot_dimension_numbers<[1], [0], [0], [1], [0, 0, 1, 1], [], []>} : vector<16x128xbf16>, vector<128x128xbf16>, vector<16x128xf32> -> vector<16x128xf32>
    %69 = vector.extract_strided_slice %63 {offsets = [0, 128], sizes = [16, 128], strides = [1, 1]} : vector<16x256xf32> to vector<16x128xf32>
    %70 = arith.addf %68, %69 : vector<16x128xf32>
    %cst_26 = arith.constant 0.000000e+00 : f32
    %71 = vector.broadcast %cst_26 : f32 to vector<16x128xf32>
    %72 = arith.maximumf %70, %71 : vector<16x128xf32>
    %73 = arith.maximumf %62, %72 : vector<16x128xf32>
    %74 = vector.extract_strided_slice %8 {offsets = [96, 0], sizes = [16, 256], strides = [1, 1]} : vector<256x256xf32> to vector<16x256xf32>
    %75 = vector.extract_strided_slice %74 {offsets = [0, 0], sizes = [16, 128], strides = [1, 1]} : vector<16x256xf32> to vector<16x128xf32>
    %cst_27 = arith.constant 0.000000e+00 : f32
    %76 = vector.broadcast %cst_27 : f32 to vector<16x128xf32>
    %77 = arith.maximumf %75, %76 : vector<16x128xf32>
    %78 = arith.truncf %77 : vector<16x128xf32> to vector<16x128xbf16>
    %cst_28 = arith.constant dense<0.000000e+00> : vector<16x128xf32>
    %79 = tpu.matmul %78, %0, %cst_28 {dimension_numbers = #tpu.dot_dimension_numbers<[1], [0], [0], [1], [0, 0, 1, 1], [], []>} : vector<16x128xbf16>, vector<128x128xbf16>, vector<16x128xf32> -> vector<16x128xf32>
    %80 = vector.extract_strided_slice %74 {offsets = [0, 128], sizes = [16, 128], strides = [1, 1]} : vector<16x256xf32> to vector<16x128xf32>
    %81 = arith.addf %79, %80 : vector<16x128xf32>
    %cst_29 = arith.constant 0.000000e+00 : f32
    %82 = vector.broadcast %cst_29 : f32 to vector<16x128xf32>
    %83 = arith.maximumf %81, %82 : vector<16x128xf32>
    %84 = arith.maximumf %73, %83 : vector<16x128xf32>
    %85 = vector.extract_strided_slice %8 {offsets = [112, 0], sizes = [16, 256], strides = [1, 1]} : vector<256x256xf32> to vector<16x256xf32>
    %86 = vector.extract_strided_slice %85 {offsets = [0, 0], sizes = [16, 128], strides = [1, 1]} : vector<16x256xf32> to vector<16x128xf32>
    %cst_30 = arith.constant 0.000000e+00 : f32
    %87 = vector.broadcast %cst_30 : f32 to vector<16x128xf32>
    %88 = arith.maximumf %86, %87 : vector<16x128xf32>
    %89 = arith.truncf %88 : vector<16x128xf32> to vector<16x128xbf16>
    %cst_31 = arith.constant dense<0.000000e+00> : vector<16x128xf32>
    %90 = tpu.matmul %89, %0, %cst_31 {dimension_numbers = #tpu.dot_dimension_numbers<[1], [0], [0], [1], [0, 0, 1, 1], [], []>} : vector<16x128xbf16>, vector<128x128xbf16>, vector<16x128xf32> -> vector<16x128xf32>
    %91 = vector.extract_strided_slice %85 {offsets = [0, 128], sizes = [16, 128], strides = [1, 1]} : vector<16x256xf32> to vector<16x128xf32>
    %92 = arith.addf %90, %91 : vector<16x128xf32>
    %cst_32 = arith.constant 0.000000e+00 : f32
    %93 = vector.broadcast %cst_32 : f32 to vector<16x128xf32>
    %94 = arith.maximumf %92, %93 : vector<16x128xf32>
    %95 = arith.maximumf %84, %94 : vector<16x128xf32>
    %96 = vector.extract_strided_slice %8 {offsets = [128, 0], sizes = [16, 256], strides = [1, 1]} : vector<256x256xf32> to vector<16x256xf32>
    %97 = vector.extract_strided_slice %96 {offsets = [0, 0], sizes = [16, 128], strides = [1, 1]} : vector<16x256xf32> to vector<16x128xf32>
    %cst_33 = arith.constant 0.000000e+00 : f32
    %98 = vector.broadcast %cst_33 : f32 to vector<16x128xf32>
    %99 = arith.maximumf %97, %98 : vector<16x128xf32>
    %100 = arith.truncf %99 : vector<16x128xf32> to vector<16x128xbf16>
    %cst_34 = arith.constant dense<0.000000e+00> : vector<16x128xf32>
    %101 = tpu.matmul %100, %0, %cst_34 {dimension_numbers = #tpu.dot_dimension_numbers<[1], [0], [0], [1], [0, 0, 1, 1], [], []>} : vector<16x128xbf16>, vector<128x128xbf16>, vector<16x128xf32> -> vector<16x128xf32>
    %102 = vector.extract_strided_slice %96 {offsets = [0, 128], sizes = [16, 128], strides = [1, 1]} : vector<16x256xf32> to vector<16x128xf32>
    %103 = arith.addf %101, %102 : vector<16x128xf32>
    %cst_35 = arith.constant 0.000000e+00 : f32
    %104 = vector.broadcast %cst_35 : f32 to vector<16x128xf32>
    %105 = arith.maximumf %103, %104 : vector<16x128xf32>
    %106 = arith.maximumf %95, %105 : vector<16x128xf32>
    %107 = vector.extract_strided_slice %8 {offsets = [144, 0], sizes = [16, 256], strides = [1, 1]} : vector<256x256xf32> to vector<16x256xf32>
    %108 = vector.extract_strided_slice %107 {offsets = [0, 0], sizes = [16, 128], strides = [1, 1]} : vector<16x256xf32> to vector<16x128xf32>
    %cst_36 = arith.constant 0.000000e+00 : f32
    %109 = vector.broadcast %cst_36 : f32 to vector<16x128xf32>
    %110 = arith.maximumf %108, %109 : vector<16x128xf32>
    %111 = arith.truncf %110 : vector<16x128xf32> to vector<16x128xbf16>
    %cst_37 = arith.constant dense<0.000000e+00> : vector<16x128xf32>
    %112 = tpu.matmul %111, %0, %cst_37 {dimension_numbers = #tpu.dot_dimension_numbers<[1], [0], [0], [1], [0, 0, 1, 1], [], []>} : vector<16x128xbf16>, vector<128x128xbf16>, vector<16x128xf32> -> vector<16x128xf32>
    %113 = vector.extract_strided_slice %107 {offsets = [0, 128], sizes = [16, 128], strides = [1, 1]} : vector<16x256xf32> to vector<16x128xf32>
    %114 = arith.addf %112, %113 : vector<16x128xf32>
    %cst_38 = arith.constant 0.000000e+00 : f32
    %115 = vector.broadcast %cst_38 : f32 to vector<16x128xf32>
    %116 = arith.maximumf %114, %115 : vector<16x128xf32>
    %117 = arith.maximumf %106, %116 : vector<16x128xf32>
    %118 = vector.extract_strided_slice %8 {offsets = [160, 0], sizes = [16, 256], strides = [1, 1]} : vector<256x256xf32> to vector<16x256xf32>
    %119 = vector.extract_strided_slice %118 {offsets = [0, 0], sizes = [16, 128], strides = [1, 1]} : vector<16x256xf32> to vector<16x128xf32>
    %cst_39 = arith.constant 0.000000e+00 : f32
    %120 = vector.broadcast %cst_39 : f32 to vector<16x128xf32>
    %121 = arith.maximumf %119, %120 : vector<16x128xf32>
    %122 = arith.truncf %121 : vector<16x128xf32> to vector<16x128xbf16>
    %cst_40 = arith.constant dense<0.000000e+00> : vector<16x128xf32>
    %123 = tpu.matmul %122, %0, %cst_40 {dimension_numbers = #tpu.dot_dimension_numbers<[1], [0], [0], [1], [0, 0, 1, 1], [], []>} : vector<16x128xbf16>, vector<128x128xbf16>, vector<16x128xf32> -> vector<16x128xf32>
    %124 = vector.extract_strided_slice %118 {offsets = [0, 128], sizes = [16, 128], strides = [1, 1]} : vector<16x256xf32> to vector<16x128xf32>
    %125 = arith.addf %123, %124 : vector<16x128xf32>
    %cst_41 = arith.constant 0.000000e+00 : f32
    %126 = vector.broadcast %cst_41 : f32 to vector<16x128xf32>
    %127 = arith.maximumf %125, %126 : vector<16x128xf32>
    %128 = arith.maximumf %117, %127 : vector<16x128xf32>
    %129 = vector.extract_strided_slice %8 {offsets = [176, 0], sizes = [16, 256], strides = [1, 1]} : vector<256x256xf32> to vector<16x256xf32>
    %130 = vector.extract_strided_slice %129 {offsets = [0, 0], sizes = [16, 128], strides = [1, 1]} : vector<16x256xf32> to vector<16x128xf32>
    %cst_42 = arith.constant 0.000000e+00 : f32
    %131 = vector.broadcast %cst_42 : f32 to vector<16x128xf32>
    %132 = arith.maximumf %130, %131 : vector<16x128xf32>
    %133 = arith.truncf %132 : vector<16x128xf32> to vector<16x128xbf16>
    %cst_43 = arith.constant dense<0.000000e+00> : vector<16x128xf32>
    %134 = tpu.matmul %133, %0, %cst_43 {dimension_numbers = #tpu.dot_dimension_numbers<[1], [0], [0], [1], [0, 0, 1, 1], [], []>} : vector<16x128xbf16>, vector<128x128xbf16>, vector<16x128xf32> -> vector<16x128xf32>
    %135 = vector.extract_strided_slice %129 {offsets = [0, 128], sizes = [16, 128], strides = [1, 1]} : vector<16x256xf32> to vector<16x128xf32>
    %136 = arith.addf %134, %135 : vector<16x128xf32>
    %cst_44 = arith.constant 0.000000e+00 : f32
    %137 = vector.broadcast %cst_44 : f32 to vector<16x128xf32>
    %138 = arith.maximumf %136, %137 : vector<16x128xf32>
    %139 = arith.maximumf %128, %138 : vector<16x128xf32>
    %140 = vector.extract_strided_slice %8 {offsets = [192, 0], sizes = [16, 256], strides = [1, 1]} : vector<256x256xf32> to vector<16x256xf32>
    %141 = vector.extract_strided_slice %140 {offsets = [0, 0], sizes = [16, 128], strides = [1, 1]} : vector<16x256xf32> to vector<16x128xf32>
    %cst_45 = arith.constant 0.000000e+00 : f32
    %142 = vector.broadcast %cst_45 : f32 to vector<16x128xf32>
    %143 = arith.maximumf %141, %142 : vector<16x128xf32>
    %144 = arith.truncf %143 : vector<16x128xf32> to vector<16x128xbf16>
    %cst_46 = arith.constant dense<0.000000e+00> : vector<16x128xf32>
    %145 = tpu.matmul %144, %0, %cst_46 {dimension_numbers = #tpu.dot_dimension_numbers<[1], [0], [0], [1], [0, 0, 1, 1], [], []>} : vector<16x128xbf16>, vector<128x128xbf16>, vector<16x128xf32> -> vector<16x128xf32>
    %146 = vector.extract_strided_slice %140 {offsets = [0, 128], sizes = [16, 128], strides = [1, 1]} : vector<16x256xf32> to vector<16x128xf32>
    %147 = arith.addf %145, %146 : vector<16x128xf32>
    %cst_47 = arith.constant 0.000000e+00 : f32
    %148 = vector.broadcast %cst_47 : f32 to vector<16x128xf32>
    %149 = arith.maximumf %147, %148 : vector<16x128xf32>
    %150 = arith.maximumf %139, %149 : vector<16x128xf32>
    %151 = vector.extract_strided_slice %8 {offsets = [208, 0], sizes = [16, 256], strides = [1, 1]} : vector<256x256xf32> to vector<16x256xf32>
    %152 = vector.extract_strided_slice %151 {offsets = [0, 0], sizes = [16, 128], strides = [1, 1]} : vector<16x256xf32> to vector<16x128xf32>
    %cst_48 = arith.constant 0.000000e+00 : f32
    %153 = vector.broadcast %cst_48 : f32 to vector<16x128xf32>
    %154 = arith.maximumf %152, %153 : vector<16x128xf32>
    %155 = arith.truncf %154 : vector<16x128xf32> to vector<16x128xbf16>
    %cst_49 = arith.constant dense<0.000000e+00> : vector<16x128xf32>
    %156 = tpu.matmul %155, %0, %cst_49 {dimension_numbers = #tpu.dot_dimension_numbers<[1], [0], [0], [1], [0, 0, 1, 1], [], []>} : vector<16x128xbf16>, vector<128x128xbf16>, vector<16x128xf32> -> vector<16x128xf32>
    %157 = vector.extract_strided_slice %151 {offsets = [0, 128], sizes = [16, 128], strides = [1, 1]} : vector<16x256xf32> to vector<16x128xf32>
    %158 = arith.addf %156, %157 : vector<16x128xf32>
    %cst_50 = arith.constant 0.000000e+00 : f32
    %159 = vector.broadcast %cst_50 : f32 to vector<16x128xf32>
    %160 = arith.maximumf %158, %159 : vector<16x128xf32>
    %161 = arith.maximumf %150, %160 : vector<16x128xf32>
    %162 = vector.extract_strided_slice %8 {offsets = [224, 0], sizes = [16, 256], strides = [1, 1]} : vector<256x256xf32> to vector<16x256xf32>
    %163 = vector.extract_strided_slice %162 {offsets = [0, 0], sizes = [16, 128], strides = [1, 1]} : vector<16x256xf32> to vector<16x128xf32>
    %cst_51 = arith.constant 0.000000e+00 : f32
    %164 = vector.broadcast %cst_51 : f32 to vector<16x128xf32>
    %165 = arith.maximumf %163, %164 : vector<16x128xf32>
    %166 = arith.truncf %165 : vector<16x128xf32> to vector<16x128xbf16>
    %cst_52 = arith.constant dense<0.000000e+00> : vector<16x128xf32>
    %167 = tpu.matmul %166, %0, %cst_52 {dimension_numbers = #tpu.dot_dimension_numbers<[1], [0], [0], [1], [0, 0, 1, 1], [], []>} : vector<16x128xbf16>, vector<128x128xbf16>, vector<16x128xf32> -> vector<16x128xf32>
    %168 = vector.extract_strided_slice %162 {offsets = [0, 128], sizes = [16, 128], strides = [1, 1]} : vector<16x256xf32> to vector<16x128xf32>
    %169 = arith.addf %167, %168 : vector<16x128xf32>
    %cst_53 = arith.constant 0.000000e+00 : f32
    %170 = vector.broadcast %cst_53 : f32 to vector<16x128xf32>
    %171 = arith.maximumf %169, %170 : vector<16x128xf32>
    %172 = arith.maximumf %161, %171 : vector<16x128xf32>
    %173 = vector.extract_strided_slice %8 {offsets = [240, 0], sizes = [16, 256], strides = [1, 1]} : vector<256x256xf32> to vector<16x256xf32>
    %174 = vector.extract_strided_slice %173 {offsets = [0, 0], sizes = [16, 128], strides = [1, 1]} : vector<16x256xf32> to vector<16x128xf32>
    %cst_54 = arith.constant 0.000000e+00 : f32
    %175 = vector.broadcast %cst_54 : f32 to vector<16x128xf32>
    %176 = arith.maximumf %174, %175 : vector<16x128xf32>
    %177 = arith.truncf %176 : vector<16x128xf32> to vector<16x128xbf16>
    %cst_55 = arith.constant dense<0.000000e+00> : vector<16x128xf32>
    %178 = tpu.matmul %177, %0, %cst_55 {dimension_numbers = #tpu.dot_dimension_numbers<[1], [0], [0], [1], [0, 0, 1, 1], [], []>} : vector<16x128xbf16>, vector<128x128xbf16>, vector<16x128xf32> -> vector<16x128xf32>
    %179 = vector.extract_strided_slice %173 {offsets = [0, 128], sizes = [16, 128], strides = [1, 1]} : vector<16x256xf32> to vector<16x128xf32>
    %180 = arith.addf %178, %179 : vector<16x128xf32>
    %cst_56 = arith.constant 0.000000e+00 : f32
    %181 = vector.broadcast %cst_56 : f32 to vector<16x128xf32>
    %182 = arith.maximumf %180, %181 : vector<16x128xf32>
    %183 = arith.maximumf %172, %182 : vector<16x128xf32>
    %c0_57 = arith.constant 0 : index
    %c0_58 = arith.constant 0 : index
    %c0_59 = arith.constant 0 : index
    %184 = vector.load %arg6[%c0_57, %c0_58, %c0_59] : memref<1x16x128xf32, #tpu.memory_space<vmem>>, vector<1x16x128xf32>
    %185 = vector.shape_cast %184 : vector<1x16x128xf32> to vector<16x128xf32>
    %186 = vector.shape_cast %183 : vector<16x128xf32> to vector<1x16x128xf32>
    tpu.vector_store %arg6[%c0_57, %c0_58, %c0_59], %186 {strides = array<i32>} : memref<1x16x128xf32, #tpu.memory_space<vmem>>, vector<1x16x128xf32>,
    return
  }
  func.func @transform_0(%arg0: i32, %arg1: i32) -> (i32, i32, i32, i32) {
    %c0_i32 = arith.constant 0 : i32
    %c0_i32_0 = arith.constant 0 : i32
    %c0_i32_1 = arith.constant 0 : i32
    return %arg0, %c0_i32, %arg1, %c0_i32_0 : i32, i32, i32, i32
  }
  func.func @transform_1(%arg0: i32, %arg1: i32) -> (i32, i32) {
    %c0_i32 = arith.constant 0 : i32
    %c0_i32_0 = arith.constant 0 : i32
    %c0_i32_1 = arith.constant 0 : i32
    return %c0_i32, %c0_i32_0 : i32, i32
  }
  func.func @transform_2(%arg0: i32, %arg1: i32) -> (i32, i32) {
    %c0_i32 = arith.constant 0 : i32
    %c0_i32_0 = arith.constant 0 : i32
    %c0_i32_1 = arith.constant 0 : i32
    return %c0_i32, %c0_i32_0 : i32, i32
  }
  func.func @transform_3(%arg0: i32, %arg1: i32) -> (i32, i32) {
    %c0_i32 = arith.constant 0 : i32
    %c0_i32_0 = arith.constant 0 : i32
    %c0_i32_1 = arith.constant 0 : i32
    return %c0_i32, %c0_i32_0 : i32, i32
  }
  func.func @transform_4(%arg0: i32, %arg1: i32) -> (i32, i32, i32) {
    %c0_i32 = arith.constant 0 : i32
    %c0_i32_0 = arith.constant 0 : i32
    return %arg0, %arg1, %c0_i32 : i32, i32, i32
  }
}

</mosaic_0001>

<llo_original>
// kernel: tpu_custom_call.1
$region0: #{tpu_custom_call.1}
  #allocation0 [shape = 'u32[]', space=smem, size = 0x4, offset = 0x4, fixed_abs, tag = 'smem constant byte address 0x4 - core index']
  #allocation1 [shape = 'u32[144,128]{1,0:T(1,128)}', space=vmem, size = 0x12000, scoped, tag = 'internal scratch']
  %s0 = inlined_call_operand.vmem [shape: bf16[2,16,16,3], index: 0, kind: input, shape index: {}]
  %s1 = inlined_call_operand.vmem [shape: bf16[3,256], index: 1, kind: input, shape index: {}]
  %s2 = inlined_call_operand.vmem [shape: f32[1,256], index: 2, kind: input, shape index: {}]
  %s3 = inlined_call_operand.vmem [shape: bf16[128,128], index: 3, kind: input, shape index: {}]
  %s4 = inlined_call_operand.hbm [shape: f32[2,16,128], index: 4, kind: output, shape index: {}]
  %s5 = sld [smem:[#allocation0]]
  $region49: #{tpu_custom_call.1} parent=0
    _
  %s7 = ssub.s32 1, %s5
  %s8 = scalar_select 0, %s7, %s5
  $region1: #{tpu_custom_call.1} parent=0
    #allocation2 [shape = 'u8[16384]{0}', space=vmem, size = 0x4000, scoped, tag = 'output window, operand 0']
    #allocation3 [shape = 's32[2]{0}', space=sflag, size = 0x8, scoped, tag = 'scoped memory for tpu_custom_call.1']
    %9 = vsyncpa [#allocation3], 0
    %s10 = scalar_lea.sflag [#allocation3], 1
    %11 = vsyncpa %s10, 0
    loop: start=0, step=1, limit=4
    $region2: #{tpu_custom_call.1} parent=1 // loop_pre_header
      _
    $region3: #{tpu_custom_call.1} parent=1 // loop_header
      %s13 = sphi 0, %s17
      %p14 = scmp.ge.s32.totalorder %s13, 4
      %s20 = sphi 0, %s32
      %s21 = sphi 0, %s28
      %s22 = sphi 0, %s20
      %s23 = sphi 0, %s21
      %s24 = sphi 0, %s22
      %s25 = sphi 0, %s23
      %s37 = sphi 0, %s39
      %s40 = sphi 0, %s37
      %s41 = sphi 0, %s40
      %s57 = sphi 0, %s41
      %s61 = sphi 0, %s61
      %s63 = sphi 0, %s61
      %s64 = sphi 0, %s63
      %s78 = sphi 0, %s64
      %s82 = sphi 0, %s82
      %s84 = sphi 0, %s82
      %s85 = sphi 0, %s84
      %s99 = sphi 0, %s85
      %s103 = sphi 0, %s103
      %s105 = sphi 0, %s103
      %s106 = sphi 0, %s105
      %s120 = sphi 0, %s106
      %s128 = sphi 0, %s130
      %s131 = sphi 0, %s128
      %s132 = sphi 0, %s131
      %s148 = sphi 0, %s132
    $region4: #{tpu_custom_call.1} parent=1 // loop_header_branch
      %16 = sbr.rel (%p14) target = $region8
    $region5: #{tpu_custom_call.1} parent=1 // loop_body
      %s18 = ssub.s32 %s13, 1
      %s19 = ssub.s32 %s13, 2
      %s26 = sadd.s32 1, %s21
      %p27 = scmp.ge.s32.totalorder %s26, 1
      %s28 = scalar_select %p27, 0, %s26
      %s29 = sadd.s32 1, %s20
      %s30 = scalar_select %p27, %s29, %s20
      %p31 = scmp.ge.s32.totalorder %s30, 2
      %s32 = scalar_select %p31, 0, %s30
      %s33 = ssub.s32 %s20, %s32
      %s34 = ssub.s32 %s21, %s28
      %s35 = sor.u32 %s33, %s34
      %p36 = scmp.eq.s32.totalorder %s35, 0
      %s38 = sadd.s32 %s37, 1
      %s39 = scalar_select %p36, %s37, %s38
      %p42 = pneg %p36
      %p43 = scmp.eq.s32.totalorder %s13, 1
      %p44 = por %p42, %p43
      %p45 = scmp.ne.s32.totalorder %s37, %s40
      %p46 = scmp.eq.s32.totalorder %s13, 0
      %p47 = por %p45, %p46
      %p48 = scmp.ne.s32.totalorder %s37, %s40
      %p49 = scmp.eq.s32.totalorder %s18, 1
      %p50 = por %p48, %p49
      %p51 = scmp.ne.s32.totalorder %s40, %s41
      %p52 = scmp.eq.s32.totalorder %s18, 0
      %p53 = por %p51, %p52
      %p54 = scmp.ne.s32.totalorder %s40, %s41
      %p55 = scmp.eq.s32.totalorder %s19, 1
      %p56 = por %p54, %p55
      %p58 = scmp.ne.s32.totalorder %s41, %s57
      %p59 = scmp.eq.s32.totalorder %s19, 0
      %p60 = por %p58, %p59
      %s62 = sadd.s32 %s61, 1
      %p65 = scmp.eq.s32.totalorder %s13, 1
      %p66 = scmp.ne.s32.totalorder %s61, %s63
      %p67 = scmp.eq.s32.totalorder %s13, 0
      %p68 = por %p66, %p67
      %p69 = scmp.ne.s32.totalorder %s61, %s63
      %p70 = scmp.eq.s32.totalorder %s18, 1
      %p71 = por %p69, %p70
      %p72 = scmp.ne.s32.totalorder %s63, %s64
      %p73 = scmp.eq.s32.totalorder %s18, 0
      %p74 = por %p72, %p73
      %p75 = scmp.ne.s32.totalorder %s63, %s64
      %p76 = scmp.eq.s32.totalorder %s19, 1
      %p77 = por %p75, %p76
      %p79 = scmp.ne.s32.totalorder %s64, %s78
      %p80 = scmp.eq.s32.totalorder %s19, 0
      %p81 = por %p79, %p80
      %s83 = sadd.s32 %s82, 1
      %p86 = scmp.eq.s32.totalorder %s13, 1
      %p87 = scmp.ne.s32.totalorder %s82, %s84
      %p88 = scmp.eq.s32.totalorder %s13, 0
      %p89 = por %p87, %p88
      %p90 = scmp.ne.s32.totalorder %s82, %s84
      %p91 = scmp.eq.s32.totalorder %s18, 1
      %p92 = por %p90, %p91
      %p93 = scmp.ne.s32.totalorder %s84, %s85
      %p94 = scmp.eq.s32.totalorder %s18, 0
      %p95 = por %p93, %p94
      %p96 = scmp.ne.s32.totalorder %s84, %s85
      %p97 = scmp.eq.s32.totalorder %s19, 1
      %p98 = por %p96, %p97
      %p100 = scmp.ne.s32.totalorder %s85, %s99
      %p101 = scmp.eq.s32.totalorder %s19, 0
      %p102 = por %p100, %p101
      %s104 = sadd.s32 %s103, 1
      %p107 = scmp.eq.s32.totalorder %s13, 1
      %p108 = scmp.ne.s32.totalorder %s103, %s105
      %p109 = scmp.eq.s32.totalorder %s13, 0
      %p110 = por %p108, %p109
      %p111 = scmp.ne.s32.totalorder %s103, %s105
      %p112 = scmp.eq.s32.totalorder %s18, 1
      %p113 = por %p111, %p112
      %p114 = scmp.ne.s32.totalorder %s105, %s106
      %p115 = scmp.eq.s32.totalorder %s18, 0
      %p116 = por %p114, %p115
      %p117 = scmp.ne.s32.totalorder %s105, %s106
      %p118 = scmp.eq.s32.totalorder %s19, 1
      %p119 = por %p117, %p118
      %p121 = scmp.ne.s32.totalorder %s106, %s120
      %p122 = scmp.eq.s32.totalorder %s19, 0
      %p123 = por %p121, %p122
      %s124 = ssub.s32 %s20, %s32
      %s125 = ssub.s32 %s21, %s28
      %s126 = sor.u32 %s124, %s125
      %p127 = scmp.eq.s32.totalorder %s126, 0
      %s129 = sadd.s32 %s128, 1
      %s130 = scalar_select %p127, %s128, %s129
      %p133 = pneg %p127
      %p134 = scmp.eq.s32.totalorder %s13, 1
      %p135 = por %p133, %p134
      %p136 = scmp.ne.s32.totalorder %s128, %s131
      %p137 = scmp.eq.s32.totalorder %s13, 0
      %p138 = por %p136, %p137
      %p139 = scmp.ne.s32.totalorder %s128, %s131
      %p140 = scmp.eq.s32.totalorder %s18, 1
      %p141 = por %p139, %p140
      %p142 = scmp.ne.s32.totalorder %s131, %s132
      %p143 = scmp.eq.s32.totalorder %s18, 0
      %p144 = por %p142, %p143
      %p145 = scmp.ne.s32.totalorder %s131, %s132
      %p146 = scmp.eq.s32.totalorder %s19, 1
      %p147 = por %p145, %p146
      %p149 = scmp.ne.s32.totalorder %s132, %s148
      %p150 = scmp.eq.s32.totalorder %s19, 0
      %p151 = por %p149, %p150
      %p152 = scmp.le.s32.totalorder 1, %s13
      %p153 = scmp.lt.s32.totalorder %s13, 3
      %p154 = pnand %p152, %p153
      %p155 = pneg %p154
      // Predicated region
      $region9: #{tpu_custom_call.1} parent=5 // pred_check
        _
      $region10: #{tpu_custom_call.1} parent=5 // pred_check_branch
        %157 = sbr.rel (%p154) target = $region12
      $region11: #{tpu_custom_call.1} parent=5 // pred_region
        %s158 = ssub.s32 %s13, 1
        // Predicated region
        $region13: #{tpu_custom_call.1} parent=11 // pred_check
          %p159 = pneg %p74
        $region14: #{tpu_custom_call.1} parent=11 // pred_check_branch
          %161 = sbr.rel (%p159) target = $region16
        $region15: #{tpu_custom_call.1} parent=11 // pred_region
          _
        $region16: #{tpu_custom_call.1} parent=11 // pred_fallthru
          _
        // Predicated region
        $region17: #{tpu_custom_call.1} parent=11 // pred_check
          %p162 = pneg %p95
        $region18: #{tpu_custom_call.1} parent=11 // pred_check_branch
          %164 = sbr.rel (%p162) target = $region20
        $region19: #{tpu_custom_call.1} parent=11 // pred_region
          _
        $region20: #{tpu_custom_call.1} parent=11 // pred_fallthru
          _
        // Predicated region
        $region21: #{tpu_custom_call.1} parent=11 // pred_check
          %p165 = pneg %p116
        $region22: #{tpu_custom_call.1} parent=11 // pred_check_branch
          %167 = sbr.rel (%p165) target = $region24
        $region23: #{tpu_custom_call.1} parent=11 // pred_region
          _
        $region24: #{tpu_custom_call.1} parent=11 // pred_fallthru
          _
      $region12: #{tpu_custom_call.1} parent=5 // pred_fallthru
        _
      %p168 = scmp.lt.s32.totalorder %s13, 2
      // Predicated region
      $region25: #{tpu_custom_call.1} parent=5 // pred_check
        %p169 = pneg %p168
      $region26: #{tpu_custom_call.1} parent=5 // pred_check_branch
        %171 = sbr.rel (%p169) target = $region28
      $region27: #{tpu_custom_call.1} parent=5 // pred_region
        // Predicated region
        $region29: #{tpu_custom_call.1} parent=27 // pred_check
          %p172 = pneg %p47
        $region30: #{tpu_custom_call.1} parent=27 // pred_check_branch
          %174 = sbr.rel (%p172) target = $region32
        $region31: #{tpu_custom_call.1} parent=27 // pred_region
          %s175 = smul.u32 2, %s21
          %p176 = scmp.lt.s32.totalorder %s20, 1
          %s177 = scalar_select %p176, %s20, 1
          %p178 = scmp.lt.s32.totalorder %s175, 1
          %s179 = scalar_select %p178, %s175, 1
          %s180 = smul.addr %s177, 32
          %s181 = sadd.s32 %s179, %s180
          %s182 = smul.addr %s181, 4
          %s183 = scalar_lea.vmem %s0, %s182
          %s184 = smul.u32 2, %s21
        $region32: #{tpu_custom_call.1} parent=27 // pred_fallthru
          _
      $region28: #{tpu_custom_call.1} parent=5 // pred_fallthru
        _
      %p185 = scmp.le.s32.totalorder 1, %s13
      %p186 = scmp.lt.s32.totalorder %s13, 3
      %p187 = pnand %p185, %p186
      %p188 = pneg %p187
      // Predicated region
      $region33: #{tpu_custom_call.1} parent=5 // pred_check
        _
      $region34: #{tpu_custom_call.1} parent=5 // pred_check_branch
        %190 = sbr.rel (%p187) target = $region36
      $region35: #{tpu_custom_call.1} parent=5 // pred_region
        %s191 = ssub.s32 %s13, 1
        %s192 = smul.u32 2, %s23
        %p193 = scmp.lt.s32.totalorder %s22, 1
        %s194 = scalar_select %p193, %s22, 1
        %p195 = scmp.lt.s32.totalorder %s192, 1
        %s196 = scalar_select %p195, %s192, 1
        %s197 = smul.addr %s194, 32
        %s198 = sadd.s32 %s196, %s197
        %s199 = smul.addr %s198, 4
        %s200 = scalar_lea.vmem %s0, %s199
        %p201 = pneg %p53
        %p202 = pneg %p50
        %p203 = pneg %p74
        %p204 = pneg %p71
        %p205 = pneg %p95
        %p206 = pneg %p92
        %p207 = pneg %p116
        %p208 = pneg %p113
        %p209 = pneg %p144
        %p210 = pneg %p141
        %s211 = sand.u32 %s131, 1
        %s212 = scalar_lea.sflag [#allocation3], %s211
        %s213 = sand.u32 %s131, 1
        %s214 = smul.addr %s213, 16
        %s215 = scalar_lea.vmem [#allocation2], %s214
        %s216 = smul.u32 2, %s23
        %p217 = scmp.lt.s32.totalorder %s22, 1
        %s218 = scalar_select %p217, %s22, 1
        %p219 = scmp.lt.s32.totalorder %s216, 1
        %s220 = scalar_select %p219, %s216, 1
        %s221 = smul.addr %s218, 32
        %s222 = sadd.s32 %s220, %s221
        %s223 = smul.addr %s222, 4
        %s224 = scalar_lea.vmem %s0, %s223
        %s225 = smul.u32 2, %s23
        %s226 = smul.u32 2, %s23
        %v228 = vld [vmem:[%s3] sm:$0xf]
        %v229 = vld [vmem:[%s3 + $0x4] sm:$0xf]
        %v230 = vld [vmem:[%s3 + $0x8] sm:$0xf]
        %v231 = vld [vmem:[%s3 + $0xc] sm:$0xf]
        %v232 = vld [vmem:[%s3 + $0x10] sm:$0xf]
        %v233 = vld [vmem:[%s3 + $0x14] sm:$0xf]
        %v234 = vld [vmem:[%s3 + $0x18] sm:$0xf]
        %v235 = vld [vmem:[%s3 + $0x1c] sm:$0xf]
        %v236 = vld [vmem:[%s3 + $0x20] sm:$0xf]
        %v237 = vld [vmem:[%s3 + $0x24] sm:$0xf]
        %v238 = vld [vmem:[%s3 + $0x28] sm:$0xf]
        %v239 = vld [vmem:[%s3 + $0x2c] sm:$0xf]
        %v240 = vld [vmem:[%s3 + $0x30] sm:$0xf]
        %v241 = vld [vmem:[%s3 + $0x34] sm:$0xf]
        %v242 = vld [vmem:[%s3 + $0x38] sm:$0xf]
        %v243 = vld [vmem:[%s3 + $0x3c] sm:$0xf]
        %v244 = vld [vmem:[%s224] sm:$0xf]
        %v245 = vld [vmem:[%s224 + $0x4] sm:$0xf]
        %v246 = vld [vmem:[%s224 + $0x8] sm:$0xf]
        %v247 = vld [vmem:[%s224 + $0xc] sm:$0xf]
        %v248 = vld [vmem:[%s224 + $0x10] sm:$0xf]
        %v249 = vld [vmem:[%s224 + $0x14] sm:$0xf]
        %v250 = vld [vmem:[%s224 + $0x18] sm:$0xf]
        %v251 = vld [vmem:[%s224 + $0x1c] sm:$0xf]
        %v252 = vld [vmem:[%s224 + $0x20] sm:$0xf]
        %v253 = vld [vmem:[%s224 + $0x24] sm:$0xf]
        %v254 = vld [vmem:[%s224 + $0x28] sm:$0xf]
        %v255 = vld [vmem:[%s224 + $0x2c] sm:$0xf]
        %v256 = vld [vmem:[%s224 + $0x30] sm:$0xf]
        %v257 = vld [vmem:[%s224 + $0x34] sm:$0xf]
        %v258 = vld [vmem:[%s224 + $0x38] sm:$0xf]
        %v259 = vld [vmem:[%s224 + $0x3c] sm:$0xf]
        %v260 = vld [vmem:[%s224 + $0x40] sm:$0xf]
        %v261 = vld [vmem:[%s224 + $0x44] sm:$0xf]
        %v262 = vld [vmem:[%s224 + $0x48] sm:$0xf]
        %v263 = vld [vmem:[%s224 + $0x4c] sm:$0xf]
        %v264 = vld [vmem:[%s224 + $0x50] sm:$0xf]
        %v265 = vld [vmem:[%s224 + $0x54] sm:$0xf]
        %v266 = vld [vmem:[%s224 + $0x58] sm:$0xf]
        %v267 = vld [vmem:[%s224 + $0x5c] sm:$0xf]
        %v268 = vld [vmem:[%s224 + $0x60] sm:$0xf]
        %v269 = vld [vmem:[%s224 + $0x64] sm:$0xf]
        %v270 = vld [vmem:[%s224 + $0x68] sm:$0xf]
        %v271 = vld [vmem:[%s224 + $0x6c] sm:$0xf]
        %v272 = vld [vmem:[%s224 + $0x70] sm:$0xf]
        %v273 = vld [vmem:[%s224 + $0x74] sm:$0xf]
        %v274 = vld [vmem:[%s224 + $0x78] sm:$0xf]
        %v275 = vld [vmem:[%s224 + $0x7c] sm:$0xf]
        %v276 = vld [vmem:[%s1] sm:$0xf]
        %v277 = vld [vmem:[%s2] sm:$0x3]
        %v279 = vlaneseq
        %v280 = vshrl.u32 %v279, 7
        %v281 = vsub.s32 0, %v280
        %v282 = vrot.slane %v277, %v281
        %v283 = vlaneseq
        %v284 = vshrl.u32 %v283, 7
        %v285 = vsub.s32 1, %v284
        %v286 = vrot.slane %v277, %v285
        %v321 = vunpack.c.l.b16 %v244
        %v322 = vunpack.c.l.b16 %v245
        %v323 = vunpack.c.l.b16 %v246
        %v324 = vunpack.c.l.b16 %v247
        %v325 = vunpack.c.l.b16 %v248
        %v326 = vunpack.c.l.b16 %v249
        %v327 = vunpack.c.l.b16 %v250
        %v328 = vunpack.c.l.b16 %v251
        %v329 = vunpack.c.l.b16 %v252
        %v330 = vunpack.c.l.b16 %v253
        %v331 = vunpack.c.l.b16 %v254
        %v332 = vunpack.c.l.b16 %v255
        %v333 = vunpack.c.l.b16 %v256
        %v334 = vunpack.c.l.b16 %v257
        %v335 = vunpack.c.l.b16 %v258
        %v336 = vunpack.c.l.b16 %v259
        %v337 = vunpack.c.l.b16 %v260
        %v338 = vunpack.c.l.b16 %v261
        %v339 = vunpack.c.l.b16 %v262
        %v340 = vunpack.c.l.b16 %v263
        %v341 = vunpack.c.l.b16 %v264
        %v342 = vunpack.c.l.b16 %v265
        %v343 = vunpack.c.l.b16 %v266
        %v344 = vunpack.c.l.b16 %v267
        %v345 = vunpack.c.l.b16 %v268
        %v346 = vunpack.c.l.b16 %v269
        %v347 = vunpack.c.l.b16 %v270
        %v348 = vunpack.c.l.b16 %v271
        %v349 = vunpack.c.l.b16 %v272
        %v350 = vunpack.c.l.b16 %v273
        %v351 = vunpack.c.l.b16 %v274
        %v352 = vunpack.c.l.b16 %v275
        %v353 = vpack.c.b16 %v322, %v321
        %v354 = vpack.c.b16 %v324, %v323
        %v355 = vpack.c.b16 %v326, %v325
        %v356 = vpack.c.b16 %v328, %v327
        %v357 = vpack.c.b16 %v330, %v329
        %v358 = vpack.c.b16 %v332, %v331
        %v359 = vpack.c.b16 %v334, %v333
        %v360 = vpack.c.b16 %v336, %v335
        %v361 = vpack.c.b16 %v338, %v337
        %v362 = vpack.c.b16 %v340, %v339
        %v363 = vpack.c.b16 %v342, %v341
        %v364 = vpack.c.b16 %v344, %v343
        %v365 = vpack.c.b16 %v346, %v345
        %v366 = vpack.c.b16 %v348, %v347
        %v367 = vpack.c.b16 %v350, %v349
        %v368 = vpack.c.b16 %v352, %v351
        %v371 = vunpack.c.l.s4 1983009808
        %v372 = vunpack.c.0.s8 %v371
        %v373 = vlaneseq
        %v374 = vshrl.u32 %v373, 7
        %v375 = vsub.s32 %v372, %v374
        %v376 = vrot.slane %v276, %v375
        %v377 = vcombine.high %v376, %v376
        %vm378 = vcmask 23552
        %v380 = vsel %vm378, %v353, 0
        %v383 = vsel %vm378, %v354, 0
        %v386 = vsel %vm378, %v355, 0
        %v389 = vsel %vm378, %v356, 0
        %v392 = vsel %vm378, %v357, 0
        %v395 = vsel %vm378, %v358, 0
        %v398 = vsel %vm378, %v359, 0
        %v401 = vsel %vm378, %v360, 0
        %v404 = vsel %vm378, %v361, 0
        %v407 = vsel %vm378, %v362, 0
        %v410 = vsel %vm378, %v363, 0
        %v413 = vsel %vm378, %v364, 0
        %v416 = vsel %vm378, %v365, 0
        %v419 = vsel %vm378, %v366, 0
        %v422 = vsel %vm378, %v367, 0
        %v425 = vsel %vm378, %v368, 0
        %vm427 = vcmask 1040384
        %vm428 = vcmask 1041408
        %v429 = vsel %vm427, 4294967295, 65535
        %v430 = vsel %vm428, %v429, 0
        %v432 = vand.u32 %v376, %v430
        %v435 = vand.u32 %v377, %v430
        %437 = vmatprep.subr.bf16.mxu0 %v435
        %438 = vmatpush1.bf16.msra.mxu0 %v432
        %439 = vmatprep.subr.bf16.mxu0 0
        %440 = vmatpush1.bf16.msra.mxu0 0
        %441 = vmatprep.subr.bf16.mxu0 0
        %442 = vmatpush1.bf16.msra.mxu0 0
        %443 = vmatprep.subr.bf16.mxu0 0
        %444 = vmatpush1.bf16.msra.mxu0 0
        %445 = vmatprep.subr.bf16.mxu0 0
        %446 = vmatpush1.bf16.msra.mxu0 0
        %447 = vmatprep.subr.bf16.mxu0 0
        %448 = vmatpush1.bf16.msra.mxu0 0
        %449 = vmatprep.subr.bf16.mxu0 0
        %450 = vmatpush1.bf16.msra.mxu0 0
        %451 = vmatprep.subr.bf16.mxu0 0
        %452 = vmatpush1.bf16.msra.mxu0 0
        %453 = vmatprep.subr.bf16.mxu0 0
        %454 = vmatpush1.bf16.msra.mxu0 0
        %455 = vmatprep.subr.bf16.mxu0 0
        %456 = vmatpush1.bf16.msra.mxu0 0
        %457 = vmatprep.subr.bf16.mxu0 0
        %458 = vmatpush1.bf16.msra.mxu0 0
        %459 = vmatprep.subr.bf16.mxu0 0
        %460 = vmatpush1.bf16.msra.mxu0 0
        %461 = vmatprep.subr.bf16.mxu0 0
        %462 = vmatpush1.bf16.msra.mxu0 0
        %463 = vmatprep.subr.bf16.mxu0 0
        %464 = vmatpush1.bf16.msra.mxu0 0
        %465 = vmatprep.subr.bf16.mxu0 0
        %466 = vmatpush1.bf16.msra.mxu0 0
        %467 = vmatprep.subr.bf16.mxu0 0
        %468 = vmatpush1.bf16.msra.mxu0 0
        %469 = vmatprep.mubr.bf16.mxu0 0
        %470 = vmatmul.mubr.bf16.gmra.mrb[0].mxu0 %v380
        %v471 = vpop.f32.mrb[0].mxu0
        %v472 = vadd.f32 %v282, %v471
        %v473 = vpop.f32.mrb[0].mxu0
        %v474 = vadd.f32 %v286, %v473
        %v475 = vpop.f32.mrb[0].mxu0
        %v476 = vadd.f32 %v282, %v475
        %v477 = vpop.f32.mrb[0].mxu0
        %v478 = vadd.f32 %v286, %v477
        %479 = vmatprep.mubr.bf16.mxu0 0
        %480 = vmatmul.mubr.bf16.gmra.mrb[0].mxu0 %v383
        %v481 = vpop.f32.mrb[0].mxu0
        %v482 = vadd.f32 %v282, %v481
        %v483 = vpop.f32.mrb[0].mxu0
        %v484 = vadd.f32 %v286, %v483
        %v485 = vpop.f32.mrb[0].mxu0
        %v486 = vadd.f32 %v282, %v485
        %v487 = vpop.f32.mrb[0].mxu0
        %v488 = vadd.f32 %v286, %v487
        %489 = vmatprep.mubr.bf16.mxu0 0
        %490 = vmatmul.mubr.bf16.gmra.mrb[0].mxu0 %v386
        %v491 = vpop.f32.mrb[0].mxu0
        %v492 = vadd.f32 %v282, %v491
        %v493 = vpop.f32.mrb[0].mxu0
        %v494 = vadd.f32 %v286, %v493
        %v495 = vpop.f32.mrb[0].mxu0
        %v496 = vadd.f32 %v282, %v495
        %v497 = vpop.f32.mrb[0].mxu0
        %v498 = vadd.f32 %v286, %v497
        %499 = vmatprep.mubr.bf16.mxu0 0
        %500 = vmatmul.mubr.bf16.gmra.mrb[0].mxu0 %v389
        %v501 = vpop.f32.mrb[0].mxu0
        %v502 = vadd.f32 %v282, %v501
        %v503 = vpop.f32.mrb[0].mxu0
        %v504 = vadd.f32 %v286, %v503
        %v505 = vpop.f32.mrb[0].mxu0
        %v506 = vadd.f32 %v282, %v505
        %v507 = vpop.f32.mrb[0].mxu0
        %v508 = vadd.f32 %v286, %v507
        %509 = vmatprep.mubr.bf16.mxu0 0
        %510 = vmatmul.mubr.bf16.gmra.mrb[0].mxu0 %v392
        %v511 = vpop.f32.mrb[0].mxu0
        %v512 = vadd.f32 %v282, %v511
        %v513 = vpop.f32.mrb[0].mxu0
        %v514 = vadd.f32 %v286, %v513
        %v515 = vpop.f32.mrb[0].mxu0
        %v516 = vadd.f32 %v282, %v515
        %v517 = vpop.f32.mrb[0].mxu0
        %v518 = vadd.f32 %v286, %v517
        %519 = vmatprep.mubr.bf16.mxu0 0
        %520 = vmatmul.mubr.bf16.gmra.mrb[0].mxu0 %v395
        %v521 = vpop.f32.mrb[0].mxu0
        %v522 = vadd.f32 %v282, %v521
        %v523 = vpop.f32.mrb[0].mxu0
        %v524 = vadd.f32 %v286, %v523
        %v525 = vpop.f32.mrb[0].mxu0
        %v526 = vadd.f32 %v282, %v525
        %v527 = vpop.f32.mrb[0].mxu0
        %v528 = vadd.f32 %v286, %v527
        %529 = vmatprep.mubr.bf16.mxu0 0
        %530 = vmatmul.mubr.bf16.gmra.mrb[0].mxu0 %v398
        %v531 = vpop.f32.mrb[0].mxu0
        %v532 = vadd.f32 %v282, %v531
        %v533 = vpop.f32.mrb[0].mxu0
        %v534 = vadd.f32 %v286, %v533
        %v535 = vpop.f32.mrb[0].mxu0
        %v536 = vadd.f32 %v282, %v535
        %v537 = vpop.f32.mrb[0].mxu0
        %v538 = vadd.f32 %v286, %v537
        %539 = vmatprep.mubr.bf16.mxu0 0
        %540 = vmatmul.mubr.bf16.gmra.mrb[0].mxu0 %v401
        %v541 = vpop.f32.mrb[0].mxu0
        %v542 = vadd.f32 %v282, %v541
        %v543 = vpop.f32.mrb[0].mxu0
        %v544 = vadd.f32 %v286, %v543
        %v545 = vpop.f32.mrb[0].mxu0
        %v546 = vadd.f32 %v282, %v545
        %v547 = vpop.f32.mrb[0].mxu0
        %v548 = vadd.f32 %v286, %v547
        %549 = vmatprep.mubr.bf16.mxu0 0
        %550 = vmatmul.mubr.bf16.gmra.mrb[0].mxu0 %v404
        %v551 = vpop.f32.mrb[0].mxu0
        %v552 = vadd.f32 %v282, %v551
        %v553 = vpop.f32.mrb[0].mxu0
        %v554 = vadd.f32 %v286, %v553
        %v555 = vpop.f32.mrb[0].mxu0
        %v556 = vadd.f32 %v282, %v555
        %v557 = vpop.f32.mrb[0].mxu0
        %v558 = vadd.f32 %v286, %v557
        %559 = vmatprep.mubr.bf16.mxu0 0
        %560 = vmatmul.mubr.bf16.gmra.mrb[0].mxu0 %v407
        %v561 = vpop.f32.mrb[0].mxu0
        %v562 = vadd.f32 %v282, %v561
        %v563 = vpop.f32.mrb[0].mxu0
        %v564 = vadd.f32 %v286, %v563
        %v565 = vpop.f32.mrb[0].mxu0
        %v566 = vadd.f32 %v282, %v565
        %v567 = vpop.f32.mrb[0].mxu0
        %v568 = vadd.f32 %v286, %v567
        %569 = vmatprep.mubr.bf16.mxu0 0
        %570 = vmatmul.mubr.bf16.gmra.mrb[0].mxu0 %v410
        %v571 = vpop.f32.mrb[0].mxu0
        %v572 = vadd.f32 %v282, %v571
        %v573 = vpop.f32.mrb[0].mxu0
        %v574 = vadd.f32 %v286, %v573
        %v575 = vpop.f32.mrb[0].mxu0
        %v576 = vadd.f32 %v282, %v575
        %v577 = vpop.f32.mrb[0].mxu0
        %v578 = vadd.f32 %v286, %v577
        %579 = vmatprep.mubr.bf16.mxu0 0
        %580 = vmatmul.mubr.bf16.gmra.mrb[0].mxu0 %v413
        %v581 = vpop.f32.mrb[0].mxu0
        %v582 = vadd.f32 %v282, %v581
        %v583 = vpop.f32.mrb[0].mxu0
        %v584 = vadd.f32 %v286, %v583
        %v585 = vpop.f32.mrb[0].mxu0
        %v586 = vadd.f32 %v282, %v585
        %v587 = vpop.f32.mrb[0].mxu0
        %v588 = vadd.f32 %v286, %v587
        %589 = vmatprep.mubr.bf16.mxu0 0
        %590 = vmatmul.mubr.bf16.gmra.mrb[0].mxu0 %v416
        %v591 = vpop.f32.mrb[0].mxu0
        %v592 = vadd.f32 %v282, %v591
        %v593 = vpop.f32.mrb[0].mxu0
        %v594 = vadd.f32 %v286, %v593
        %v595 = vpop.f32.mrb[0].mxu0
        %v596 = vadd.f32 %v282, %v595
        %v597 = vpop.f32.mrb[0].mxu0
        %v598 = vadd.f32 %v286, %v597
        %599 = vmatprep.mubr.bf16.mxu0 0
        %600 = vmatmul.mubr.bf16.gmra.mrb[0].mxu0 %v419
        %v601 = vpop.f32.mrb[0].mxu0
        %v602 = vadd.f32 %v282, %v601
        %v603 = vpop.f32.mrb[0].mxu0
        %v604 = vadd.f32 %v286, %v603
        %v605 = vpop.f32.mrb[0].mxu0
        %v606 = vadd.f32 %v282, %v605
        %v607 = vpop.f32.mrb[0].mxu0
        %v608 = vadd.f32 %v286, %v607
        %609 = vmatprep.mubr.bf16.mxu0 0
        %610 = vmatmul.mubr.bf16.gmra.mrb[0].mxu0 %v422
        %v611 = vpop.f32.mrb[0].mxu0
        %v612 = vadd.f32 %v282, %v611
        %v613 = vpop.f32.mrb[0].mxu0
        %v614 = vadd.f32 %v286, %v613
        %v615 = vpop.f32.mrb[0].mxu0
        %v616 = vadd.f32 %v282, %v615
        %v617 = vpop.f32.mrb[0].mxu0
        %v618 = vadd.f32 %v286, %v617
        %619 = vmatprep.mubr.bf16.mxu0 0
        %620 = vmatmul.mubr.bf16.gmra.mrb[0].mxu0 %v425
        %v621 = vpop.f32.mrb[0].mxu0
        %v622 = vadd.f32 %v282, %v621
        %v623 = vpop.f32.mrb[0].mxu0
        %v624 = vadd.f32 %v286, %v623
        %v625 = vpop.f32.mrb[0].mxu0
        %v626 = vadd.f32 %v282, %v625
        %v627 = vpop.f32.mrb[0].mxu0
        %v628 = vadd.f32 %v286, %v627
        %629 = vdwg.mxu0
        %v630 = vmax.f32 %v472, 0.0
        %v631 = vmax.f32 %v476, 0.0
        %v632 = vpack.c.bf16 %v631, %v630
        %v649 = vunpack.c.l.b16 %v228
        %v650 = vunpack.c.l.b16 %v229
        %v651 = vunpack.c.l.b16 %v230
        %v652 = vunpack.c.l.b16 %v231
        %v653 = vunpack.c.l.b16 %v232
        %v654 = vunpack.c.l.b16 %v233
        %v655 = vunpack.c.l.b16 %v234
        %v656 = vunpack.c.l.b16 %v235
        %v657 = vunpack.c.l.b16 %v236
        %v658 = vunpack.c.l.b16 %v237
        %v659 = vunpack.c.l.b16 %v238
        %v660 = vunpack.c.l.b16 %v239
        %v661 = vunpack.c.l.b16 %v240
        %v662 = vunpack.c.l.b16 %v241
        %v663 = vunpack.c.l.b16 %v242
        %v664 = vunpack.c.l.b16 %v243
        %v665 = vpack.c.b16 %v650, %v649
        %v666 = vpack.c.b16 %v652, %v651
        %v667 = vpack.c.b16 %v654, %v653
        %v668 = vpack.c.b16 %v656, %v655
        %v669 = vpack.c.b16 %v658, %v657
        %v670 = vpack.c.b16 %v660, %v659
        %v671 = vpack.c.b16 %v662, %v661
        %v672 = vpack.c.b16 %v664, %v663
        %681 = vmatprep.subr.bf16.mxu0 0
        %682 = vmatpush1.bf16.msra.mxu0 %v665
        %683 = vmatprep.subr.bf16.mxu0 0
        %684 = vmatpush1.bf16.msra.mxu0 %v666
        %685 = vmatprep.subr.bf16.mxu0 0
        %686 = vmatpush1.bf16.msra.mxu0 %v667
        %687 = vmatprep.subr.bf16.mxu0 0
        %688 = vmatpush1.bf16.msra.mxu0 %v668
        %689 = vmatprep.subr.bf16.mxu0 0
        %690 = vmatpush1.bf16.msra.mxu0 %v669
        %691 = vmatprep.subr.bf16.mxu0 0
        %692 = vmatpush1.bf16.msra.mxu0 %v670
        %693 = vmatprep.subr.bf16.mxu0 0
        %694 = vmatpush1.bf16.msra.mxu0 %v671
        %695 = vmatprep.subr.bf16.mxu0 0
        %696 = vmatpush1.bf16.msra.mxu0 %v672
        %697 = vmatprep.subr.bf16.mxu0 0
        %698 = vmatpush1.bf16.msra.mxu0 0
        %699 = vmatprep.subr.bf16.mxu0 0
        %700 = vmatpush1.bf16.msra.mxu0 0
        %701 = vmatprep.subr.bf16.mxu0 0
        %702 = vmatpush1.bf16.msra.mxu0 0
        %703 = vmatprep.subr.bf16.mxu0 0
        %704 = vmatpush1.bf16.msra.mxu0 0
        %705 = vmatprep.subr.bf16.mxu0 0
        %706 = vmatpush1.bf16.msra.mxu0 0
        %707 = vmatprep.subr.bf16.mxu0 0
        %708 = vmatpush1.bf16.msra.mxu0 0
        %709 = vmatprep.subr.bf16.mxu0 0
        %710 = vmatpush1.bf16.msra.mxu0 0
        %711 = vmatprep.subr.bf16.mxu0 0
        %712 = vmatpush1.bf16.msra.mxu0 0
        %713 = vmatprep.mubr.bf16.mxu0 0
        %714 = vmatmul.mubr.bf16.gmra.mrb[0].mxu0 %v632
        %v715 = vpop.f32.mrb[0].mxu0
        %v716 = vadd.f32 %v474, %v715
        %v717 = vpop.f32.mrb[0].mxu0
        %v718 = vpop.f32.mrb[0].mxu0
        %v719 = vadd.f32 %v478, %v718
        %v720 = vpop.f32.mrb[0].mxu0
        %721 = vdwg.mxu0
        %v722 = vmax.f32 %v716, 0.0
        %v723 = vmax.f32 %v719, 0.0
        %v724 = vmax.f32 %v482, 0.0
        %v725 = vmax.f32 %v486, 0.0
        %v726 = vpack.c.bf16 %v725, %v724
        %727 = vmatprep.subr.bf16.mxu0 0
        %728 = vmatpush1.bf16.msra.mxu0 %v665
        %729 = vmatprep.subr.bf16.mxu0 0
        %730 = vmatpush1.bf16.msra.mxu0 %v666
        %731 = vmatprep.subr.bf16.mxu0 0
        %732 = vmatpush1.bf16.msra.mxu0 %v667
        %733 = vmatprep.subr.bf16.mxu0 0
        %734 = vmatpush1.bf16.msra.mxu0 %v668
        %735 = vmatprep.subr.bf16.mxu0 0
        %736 = vmatpush1.bf16.msra.mxu0 %v669
        %737 = vmatprep.subr.bf16.mxu0 0
        %738 = vmatpush1.bf16.msra.mxu0 %v670
        %739 = vmatprep.subr.bf16.mxu0 0
        %740 = vmatpush1.bf16.msra.mxu0 %v671
        %741 = vmatprep.subr.bf16.mxu0 0
        %742 = vmatpush1.bf16.msra.mxu0 %v672
        %743 = vmatprep.subr.bf16.mxu0 0
        %744 = vmatpush1.bf16.msra.mxu0 0
        %745 = vmatprep.subr.bf16.mxu0 0
        %746 = vmatpush1.bf16.msra.mxu0 0
        %747 = vmatprep.subr.bf16.mxu0 0
        %748 = vmatpush1.bf16.msra.mxu0 0
        %749 = vmatprep.subr.bf16.mxu0 0
        %750 = vmatpush1.bf16.msra.mxu0 0
        %751 = vmatprep.subr.bf16.mxu0 0
        %752 = vmatpush1.bf16.msra.mxu0 0
        %753 = vmatprep.subr.bf16.mxu0 0
        %754 = vmatpush1.bf16.msra.mxu0 0
        %755 = vmatprep.subr.bf16.mxu0 0
        %756 = vmatpush1.bf16.msra.mxu0 0
        %757 = vmatprep.subr.bf16.mxu0 0
        %758 = vmatpush1.bf16.msra.mxu0 0
        %759 = vmatprep.mubr.bf16.mxu0 0
        %760 = vmatmul.mubr.bf16.gmra.mrb[0].mxu0 %v726
        %v761 = vpop.f32.mrb[0].mxu0
        %v762 = vadd.f32 %v484, %v761
        %v763 = vpop.f32.mrb[0].mxu0
        %v764 = vpop.f32.mrb[0].mxu0
        %v765 = vadd.f32 %v488, %v764
        %v766 = vpop.f32.mrb[0].mxu0
        %767 = vdwg.mxu0
        %v768 = vmax.f32 %v762, 0.0
        %v769 = vmax.f32 %v765, 0.0
        %v770 = vmax.f32 %v722, %v768
        %v771 = vmax.f32 %v723, %v769
        %v772 = vmax.f32 %v492, 0.0
        %v773 = vmax.f32 %v496, 0.0
        %v774 = vpack.c.bf16 %v773, %v772
        %775 = vmatprep.subr.bf16.mxu0 0
        %776 = vmatpush1.bf16.msra.mxu0 %v665
        %777 = vmatprep.subr.bf16.mxu0 0
        %778 = vmatpush1.bf16.msra.mxu0 %v666
        %779 = vmatprep.subr.bf16.mxu0 0
        %780 = vmatpush1.bf16.msra.mxu0 %v667
        %781 = vmatprep.subr.bf16.mxu0 0
        %782 = vmatpush1.bf16.msra.mxu0 %v668
        %783 = vmatprep.subr.bf16.mxu0 0
        %784 = vmatpush1.bf16.msra.mxu0 %v669
        %785 = vmatprep.subr.bf16.mxu0 0
        %786 = vmatpush1.bf16.msra.mxu0 %v670
        %787 = vmatprep.subr.bf16.mxu0 0
        %788 = vmatpush1.bf16.msra.mxu0 %v671
        %789 = vmatprep.subr.bf16.mxu0 0
        %790 = vmatpush1.bf16.msra.mxu0 %v672
        %791 = vmatprep.subr.bf16.mxu0 0
        %792 = vmatpush1.bf16.msra.mxu0 0
        %793 = vmatprep.subr.bf16.mxu0 0
        %794 = vmatpush1.bf16.msra.mxu0 0
        %795 = vmatprep.subr.bf16.mxu0 0
        %796 = vmatpush1.bf16.msra.mxu0 0
        %797 = vmatprep.subr.bf16.mxu0 0
        %798 = vmatpush1.bf16.msra.mxu0 0
        %799 = vmatprep.subr.bf16.mxu0 0
        %800 = vmatpush1.bf16.msra.mxu0 0
        %801 = vmatprep.subr.bf16.mxu0 0
        %802 = vmatpush1.bf16.msra.mxu0 0
        %803 = vmatprep.subr.bf16.mxu0 0
        %804 = vmatpush1.bf16.msra.mxu0 0
        %805 = vmatprep.subr.bf16.mxu0 0
        %806 = vmatpush1.bf16.msra.mxu0 0
        %807 = vmatprep.mubr.bf16.mxu0 0
        %808 = vmatmul.mubr.bf16.gmra.mrb[0].mxu0 %v774
        %v809 = vpop.f32.mrb[0].mxu0
        %v810 = vadd.f32 %v494, %v809
        %v811 = vpop.f32.mrb[0].mxu0
        %v812 = vpop.f32.mrb[0].mxu0
        %v813 = vadd.f32 %v498, %v812
        %v814 = vpop.f32.mrb[0].mxu0
        %815 = vdwg.mxu0
        %v816 = vmax.f32 %v810, 0.0
        %v817 = vmax.f32 %v813, 0.0
        %v818 = vmax.f32 %v770, %v816
        %v819 = vmax.f32 %v771, %v817
        %v820 = vmax.f32 %v502, 0.0
        %v821 = vmax.f32 %v506, 0.0
        %v822 = vpack.c.bf16 %v821, %v820
        %823 = vmatprep.subr.bf16.mxu0 0
        %824 = vmatpush1.bf16.msra.mxu0 %v665
        %825 = vmatprep.subr.bf16.mxu0 0
        %826 = vmatpush1.bf16.msra.mxu0 %v666
        %827 = vmatprep.subr.bf16.mxu0 0
        %828 = vmatpush1.bf16.msra.mxu0 %v667
        %829 = vmatprep.subr.bf16.mxu0 0
        %830 = vmatpush1.bf16.msra.mxu0 %v668
        %831 = vmatprep.subr.bf16.mxu0 0
        %832 = vmatpush1.bf16.msra.mxu0 %v669
        %833 = vmatprep.subr.bf16.mxu0 0
        %834 = vmatpush1.bf16.msra.mxu0 %v670
        %835 = vmatprep.subr.bf16.mxu0 0
        %836 = vmatpush1.bf16.msra.mxu0 %v671
        %837 = vmatprep.subr.bf16.mxu0 0
        %838 = vmatpush1.bf16.msra.mxu0 %v672
        %839 = vmatprep.subr.bf16.mxu0 0
        %840 = vmatpush1.bf16.msra.mxu0 0
        %841 = vmatprep.subr.bf16.mxu0 0
        %842 = vmatpush1.bf16.msra.mxu0 0
        %843 = vmatprep.subr.bf16.mxu0 0
        %844 = vmatpush1.bf16.msra.mxu0 0
        %845 = vmatprep.subr.bf16.mxu0 0
        %846 = vmatpush1.bf16.msra.mxu0 0
        %847 = vmatprep.subr.bf16.mxu0 0
        %848 = vmatpush1.bf16.msra.mxu0 0
        %849 = vmatprep.subr.bf16.mxu0 0
        %850 = vmatpush1.bf16.msra.mxu0 0
        %851 = vmatprep.subr.bf16.mxu0 0
        %852 = vmatpush1.bf16.msra.mxu0 0
        %853 = vmatprep.subr.bf16.mxu0 0
        %854 = vmatpush1.bf16.msra.mxu0 0
        %855 = vmatprep.mubr.bf16.mxu0 0
        %856 = vmatmul.mubr.bf16.gmra.mrb[0].mxu0 %v822
        %v857 = vpop.f32.mrb[0].mxu0
        %v858 = vadd.f32 %v504, %v857
        %v859 = vpop.f32.mrb[0].mxu0
        %v860 = vpop.f32.mrb[0].mxu0
        %v861 = vadd.f32 %v508, %v860
        %v862 = vpop.f32.mrb[0].mxu0
        %863 = vdwg.mxu0
        %v864 = vmax.f32 %v858, 0.0
        %v865 = vmax.f32 %v861, 0.0
        %v866 = vmax.f32 %v818, %v864
        %v867 = vmax.f32 %v819, %v865
        %v868 = vmax.f32 %v512, 0.0
        %v869 = vmax.f32 %v516, 0.0
        %v870 = vpack.c.bf16 %v869, %v868
        %871 = vmatprep.subr.bf16.mxu0 0
        %872 = vmatpush1.bf16.msra.mxu0 %v665
        %873 = vmatprep.subr.bf16.mxu0 0
        %874 = vmatpush1.bf16.msra.mxu0 %v666
        %875 = vmatprep.subr.bf16.mxu0 0
        %876 = vmatpush1.bf16.msra.mxu0 %v667
        %877 = vmatprep.subr.bf16.mxu0 0
        %878 = vmatpush1.bf16.msra.mxu0 %v668
        %879 = vmatprep.subr.bf16.mxu0 0
        %880 = vmatpush1.bf16.msra.mxu0 %v669
        %881 = vmatprep.subr.bf16.mxu0 0
        %882 = vmatpush1.bf16.msra.mxu0 %v670
        %883 = vmatprep.subr.bf16.mxu0 0
        %884 = vmatpush1.bf16.msra.mxu0 %v671
        %885 = vmatprep.subr.bf16.mxu0 0
        %886 = vmatpush1.bf16.msra.mxu0 %v672
        %887 = vmatprep.subr.bf16.mxu0 0
        %888 = vmatpush1.bf16.msra.mxu0 0
        %889 = vmatprep.subr.bf16.mxu0 0
        %890 = vmatpush1.bf16.msra.mxu0 0
        %891 = vmatprep.subr.bf16.mxu0 0
        %892 = vmatpush1.bf16.msra.mxu0 0
        %893 = vmatprep.subr.bf16.mxu0 0
        %894 = vmatpush1.bf16.msra.mxu0 0
        %895 = vmatprep.subr.bf16.mxu0 0
        %896 = vmatpush1.bf16.msra.mxu0 0
        %897 = vmatprep.subr.bf16.mxu0 0
        %898 = vmatpush1.bf16.msra.mxu0 0
        %899 = vmatprep.subr.bf16.mxu0 0
        %900 = vmatpush1.bf16.msra.mxu0 0
        %901 = vmatprep.subr.bf16.mxu0 0
        %902 = vmatpush1.bf16.msra.mxu0 0
        %903 = vmatprep.mubr.bf16.mxu0 0
        %904 = vmatmul.mubr.bf16.gmra.mrb[0].mxu0 %v870
        %v905 = vpop.f32.mrb[0].mxu0
        %v906 = vadd.f32 %v514, %v905
        %v907 = vpop.f32.mrb[0].mxu0
        %v908 = vpop.f32.mrb[0].mxu0
        %v909 = vadd.f32 %v518, %v908
        %v910 = vpop.f32.mrb[0].mxu0
        %911 = vdwg.mxu0
        %v912 = vmax.f32 %v906, 0.0
        %v913 = vmax.f32 %v909, 0.0
        %v914 = vmax.f32 %v866, %v912
        %v915 = vmax.f32 %v867, %v913
        %v916 = vmax.f32 %v522, 0.0
        %v917 = vmax.f32 %v526, 0.0
        %v918 = vpack.c.bf16 %v917, %v916
        %919 = vmatprep.subr.bf16.mxu0 0
        %920 = vmatpush1.bf16.msra.mxu0 %v665
        %921 = vmatprep.subr.bf16.mxu0 0
        %922 = vmatpush1.bf16.msra.mxu0 %v666
        %923 = vmatprep.subr.bf16.mxu0 0
        %924 = vmatpush1.bf16.msra.mxu0 %v667
        %925 = vmatprep.subr.bf16.mxu0 0
        %926 = vmatpush1.bf16.msra.mxu0 %v668
        %927 = vmatprep.subr.bf16.mxu0 0
        %928 = vmatpush1.bf16.msra.mxu0 %v669
        %929 = vmatprep.subr.bf16.mxu0 0
        %930 = vmatpush1.bf16.msra.mxu0 %v670
        %931 = vmatprep.subr.bf16.mxu0 0
        %932 = vmatpush1.bf16.msra.mxu0 %v671
        %933 = vmatprep.subr.bf16.mxu0 0
        %934 = vmatpush1.bf16.msra.mxu0 %v672
        %935 = vmatprep.subr.bf16.mxu0 0
        %936 = vmatpush1.bf16.msra.mxu0 0
        %937 = vmatprep.subr.bf16.mxu0 0
        %938 = vmatpush1.bf16.msra.mxu0 0
        %939 = vmatprep.subr.bf16.mxu0 0
        %940 = vmatpush1.bf16.msra.mxu0 0
        %941 = vmatprep.subr.bf16.mxu0 0
        %942 = vmatpush1.bf16.msra.mxu0 0
        %943 = vmatprep.subr.bf16.mxu0 0
        %944 = vmatpush1.bf16.msra.mxu0 0
        %945 = vmatprep.subr.bf16.mxu0 0
        %946 = vmatpush1.bf16.msra.mxu0 0
        %947 = vmatprep.subr.bf16.mxu0 0
        %948 = vmatpush1.bf16.msra.mxu0 0
        %949 = vmatprep.subr.bf16.mxu0 0
        %950 = vmatpush1.bf16.msra.mxu0 0
        %951 = vmatprep.mubr.bf16.mxu0 0
        %952 = vmatmul.mubr.bf16.gmra.mrb[0].mxu0 %v918
        %v953 = vpop.f32.mrb[0].mxu0
        %v954 = vadd.f32 %v524, %v953
        %v955 = vpop.f32.mrb[0].mxu0
        %v956 = vpop.f32.mrb[0].mxu0
        %v957 = vadd.f32 %v528, %v956
        %v958 = vpop.f32.mrb[0].mxu0
        %959 = vdwg.mxu0
        %v960 = vmax.f32 %v954, 0.0
        %v961 = vmax.f32 %v957, 0.0
        %v962 = vmax.f32 %v914, %v960
        %v963 = vmax.f32 %v915, %v961
        %v964 = vmax.f32 %v532, 0.0
        %v965 = vmax.f32 %v536, 0.0
        %v966 = vpack.c.bf16 %v965, %v964
        %967 = vmatprep.subr.bf16.mxu0 0
        %968 = vmatpush1.bf16.msra.mxu0 %v665
        %969 = vmatprep.subr.bf16.mxu0 0
        %970 = vmatpush1.bf16.msra.mxu0 %v666
        %971 = vmatprep.subr.bf16.mxu0 0
        %972 = vmatpush1.bf16.msra.mxu0 %v667
        %973 = vmatprep.subr.bf16.mxu0 0
        %974 = vmatpush1.bf16.msra.mxu0 %v668
        %975 = vmatprep.subr.bf16.mxu0 0
        %976 = vmatpush1.bf16.msra.mxu0 %v669
        %977 = vmatprep.subr.bf16.mxu0 0
        %978 = vmatpush1.bf16.msra.mxu0 %v670
        %979 = vmatprep.subr.bf16.mxu0 0
        %980 = vmatpush1.bf16.msra.mxu0 %v671
        %981 = vmatprep.subr.bf16.mxu0 0
        %982 = vmatpush1.bf16.msra.mxu0 %v672
        %983 = vmatprep.subr.bf16.mxu0 0
        %984 = vmatpush1.bf16.msra.mxu0 0
        %985 = vmatprep.subr.bf16.mxu0 0
        %986 = vmatpush1.bf16.msra.mxu0 0
        %987 = vmatprep.subr.bf16.mxu0 0
        %988 = vmatpush1.bf16.msra.mxu0 0
        %989 = vmatprep.subr.bf16.mxu0 0
        %990 = vmatpush1.bf16.msra.mxu0 0
        %991 = vmatprep.subr.bf16.mxu0 0
        %992 = vmatpush1.bf16.msra.mxu0 0
        %993 = vmatprep.subr.bf16.mxu0 0
        %994 = vmatpush1.bf16.msra.mxu0 0
        %995 = vmatprep.subr.bf16.mxu0 0
        %996 = vmatpush1.bf16.msra.mxu0 0
        %997 = vmatprep.subr.bf16.mxu0 0
        %998 = vmatpush1.bf16.msra.mxu0 0
        %999 = vmatprep.mubr.bf16.mxu0 0
        %1000 = vmatmul.mubr.bf16.gmra.mrb[0].mxu0 %v966
        %v1001 = vpop.f32.mrb[0].mxu0
        %v1002 = vadd.f32 %v534, %v1001
        %v1003 = vpop.f32.mrb[0].mxu0
        %v1004 = vpop.f32.mrb[0].mxu0
        %v1005 = vadd.f32 %v538, %v1004
        %v1006 = vpop.f32.mrb[0].mxu0
        %1007 = vdwg.mxu0
        %v1008 = vmax.f32 %v1002, 0.0
        %v1009 = vmax.f32 %v1005, 0.0
        %v1010 = vmax.f32 %v962, %v1008
        %v1011 = vmax.f32 %v963, %v1009
        %v1012 = vmax.f32 %v542, 0.0
        %v1013 = vmax.f32 %v546, 0.0
        %v1014 = vpack.c.bf16 %v1013, %v1012
        %1015 = vmatprep.subr.bf16.mxu0 0
        %1016 = vmatpush1.bf16.msra.mxu0 %v665
        %1017 = vmatprep.subr.bf16.mxu0 0
        %1018 = vmatpush1.bf16.msra.mxu0 %v666
        %1019 = vmatprep.subr.bf16.mxu0 0
        %1020 = vmatpush1.bf16.msra.mxu0 %v667
        %1021 = vmatprep.subr.bf16.mxu0 0
        %1022 = vmatpush1.bf16.msra.mxu0 %v668
        %1023 = vmatprep.subr.bf16.mxu0 0
        %1024 = vmatpush1.bf16.msra.mxu0 %v669
        %1025 = vmatprep.subr.bf16.mxu0 0
        %1026 = vmatpush1.bf16.msra.mxu0 %v670
        %1027 = vmatprep.subr.bf16.mxu0 0
        %1028 = vmatpush1.bf16.msra.mxu0 %v671
        %1029 = vmatprep.subr.bf16.mxu0 0
        %1030 = vmatpush1.bf16.msra.mxu0 %v672
        %1031 = vmatprep.subr.bf16.mxu0 0
        %1032 = vmatpush1.bf16.msra.mxu0 0
        %1033 = vmatprep.subr.bf16.mxu0 0
        %1034 = vmatpush1.bf16.msra.mxu0 0
        %1035 = vmatprep.subr.bf16.mxu0 0
        %1036 = vmatpush1.bf16.msra.mxu0 0
        %1037 = vmatprep.subr.bf16.mxu0 0
        %1038 = vmatpush1.bf16.msra.mxu0 0
        %1039 = vmatprep.subr.bf16.mxu0 0
        %1040 = vmatpush1.bf16.msra.mxu0 0
        %1041 = vmatprep.subr.bf16.mxu0 0
        %1042 = vmatpush1.bf16.msra.mxu0 0
        %1043 = vmatprep.subr.bf16.mxu0 0
        %1044 = vmatpush1.bf16.msra.mxu0 0
        %1045 = vmatprep.subr.bf16.mxu0 0
        %1046 = vmatpush1.bf16.msra.mxu0 0
        %1047 = vmatprep.mubr.bf16.mxu0 0
        %1048 = vmatmul.mubr.bf16.gmra.mrb[0].mxu0 %v1014
        %v1049 = vpop.f32.mrb[0].mxu0
        %v1050 = vadd.f32 %v544, %v1049
        %v1051 = vpop.f32.mrb[0].mxu0
        %v1052 = vpop.f32.mrb[0].mxu0
        %v1053 = vadd.f32 %v548, %v1052
        %v1054 = vpop.f32.mrb[0].mxu0
        %1055 = vdwg.mxu0
        %v1056 = vmax.f32 %v1050, 0.0
        %v1057 = vmax.f32 %v1053, 0.0
        %v1058 = vmax.f32 %v1010, %v1056
        %v1059 = vmax.f32 %v1011, %v1057
        %v1060 = vmax.f32 %v552, 0.0
        %v1061 = vmax.f32 %v556, 0.0
        %v1062 = vpack.c.bf16 %v1061, %v1060
        %1063 = vmatprep.subr.bf16.mxu0 0
        %1064 = vmatpush1.bf16.msra.mxu0 %v665
        %1065 = vmatprep.subr.bf16.mxu0 0
        %1066 = vmatpush1.bf16.msra.mxu0 %v666
        %1067 = vmatprep.subr.bf16.mxu0 0
        %1068 = vmatpush1.bf16.msra.mxu0 %v667
        %1069 = vmatprep.subr.bf16.mxu0 0
        %1070 = vmatpush1.bf16.msra.mxu0 %v668
        %1071 = vmatprep.subr.bf16.mxu0 0
        %1072 = vmatpush1.bf16.msra.mxu0 %v669
        %1073 = vmatprep.subr.bf16.mxu0 0
        %1074 = vmatpush1.bf16.msra.mxu0 %v670
        %1075 = vmatprep.subr.bf16.mxu0 0
        %1076 = vmatpush1.bf16.msra.mxu0 %v671
        %1077 = vmatprep.subr.bf16.mxu0 0
        %1078 = vmatpush1.bf16.msra.mxu0 %v672
        %1079 = vmatprep.subr.bf16.mxu0 0
        %1080 = vmatpush1.bf16.msra.mxu0 0
        %1081 = vmatprep.subr.bf16.mxu0 0
        %1082 = vmatpush1.bf16.msra.mxu0 0
        %1083 = vmatprep.subr.bf16.mxu0 0
        %1084 = vmatpush1.bf16.msra.mxu0 0
        %1085 = vmatprep.subr.bf16.mxu0 0
        %1086 = vmatpush1.bf16.msra.mxu0 0
        %1087 = vmatprep.subr.bf16.mxu0 0
        %1088 = vmatpush1.bf16.msra.mxu0 0
        %1089 = vmatprep.subr.bf16.mxu0 0
        %1090 = vmatpush1.bf16.msra.mxu0 0
        %1091 = vmatprep.subr.bf16.mxu0 0
        %1092 = vmatpush1.bf16.msra.mxu0 0
        %1093 = vmatprep.subr.bf16.mxu0 0
        %1094 = vmatpush1.bf16.msra.mxu0 0
        %1095 = vmatprep.mubr.bf16.mxu0 0
        %1096 = vmatmul.mubr.bf16.gmra.mrb[0].mxu0 %v1062
        %v1097 = vpop.f32.mrb[0].mxu0
        %v1098 = vadd.f32 %v554, %v1097
        %v1099 = vpop.f32.mrb[0].mxu0
        %v1100 = vpop.f32.mrb[0].mxu0
        %v1101 = vadd.f32 %v558, %v1100
        %v1102 = vpop.f32.mrb[0].mxu0
        %1103 = vdwg.mxu0
        %v1104 = vmax.f32 %v1098, 0.0
        %v1105 = vmax.f32 %v1101, 0.0
        %v1106 = vmax.f32 %v1058, %v1104
        %v1107 = vmax.f32 %v1059, %v1105
        %v1108 = vmax.f32 %v562, 0.0
        %v1109 = vmax.f32 %v566, 0.0
        %v1110 = vpack.c.bf16 %v1109, %v1108
        %1111 = vmatprep.subr.bf16.mxu0 0
        %1112 = vmatpush1.bf16.msra.mxu0 %v665
        %1113 = vmatprep.subr.bf16.mxu0 0
        %1114 = vmatpush1.bf16.msra.mxu0 %v666
        %1115 = vmatprep.subr.bf16.mxu0 0
        %1116 = vmatpush1.bf16.msra.mxu0 %v667
        %1117 = vmatprep.subr.bf16.mxu0 0
        %1118 = vmatpush1.bf16.msra.mxu0 %v668
        %1119 = vmatprep.subr.bf16.mxu0 0
        %1120 = vmatpush1.bf16.msra.mxu0 %v669
        %1121 = vmatprep.subr.bf16.mxu0 0
        %1122 = vmatpush1.bf16.msra.mxu0 %v670
        %1123 = vmatprep.subr.bf16.mxu0 0
        %1124 = vmatpush1.bf16.msra.mxu0 %v671
        %1125 = vmatprep.subr.bf16.mxu0 0
        %1126 = vmatpush1.bf16.msra.mxu0 %v672
        %1127 = vmatprep.subr.bf16.mxu0 0
        %1128 = vmatpush1.bf16.msra.mxu0 0
        %1129 = vmatprep.subr.bf16.mxu0 0
        %1130 = vmatpush1.bf16.msra.mxu0 0
        %1131 = vmatprep.subr.bf16.mxu0 0
        %1132 = vmatpush1.bf16.msra.mxu0 0
        %1133 = vmatprep.subr.bf16.mxu0 0
        %1134 = vmatpush1.bf16.msra.mxu0 0
        %1135 = vmatprep.subr.bf16.mxu0 0
        %1136 = vmatpush1.bf16.msra.mxu0 0
        %1137 = vmatprep.subr.bf16.mxu0 0
        %1138 = vmatpush1.bf16.msra.mxu0 0
        %1139 = vmatprep.subr.bf16.mxu0 0
        %1140 = vmatpush1.bf16.msra.mxu0 0
        %1141 = vmatprep.subr.bf16.mxu0 0
        %1142 = vmatpush1.bf16.msra.mxu0 0
        %1143 = vmatprep.mubr.bf16.mxu0 0
        %1144 = vmatmul.mubr.bf16.gmra.mrb[0].mxu0 %v1110
        %v1145 = vpop.f32.mrb[0].mxu0
        %v1146 = vadd.f32 %v564, %v1145
        %v1147 = vpop.f32.mrb[0].mxu0
        %v1148 = vpop.f32.mrb[0].mxu0
        %v1149 = vadd.f32 %v568, %v1148
        %v1150 = vpop.f32.mrb[0].mxu0
        %1151 = vdwg.mxu0
        %v1152 = vmax.f32 %v1146, 0.0
        %v1153 = vmax.f32 %v1149, 0.0
        %v1154 = vmax.f32 %v1106, %v1152
        %v1155 = vmax.f32 %v1107, %v1153
        %v1156 = vmax.f32 %v572, 0.0
        %v1157 = vmax.f32 %v576, 0.0
        %v1158 = vpack.c.bf16 %v1157, %v1156
        %1159 = vmatprep.subr.bf16.mxu0 0
        %1160 = vmatpush1.bf16.msra.mxu0 %v665
        %1161 = vmatprep.subr.bf16.mxu0 0
        %1162 = vmatpush1.bf16.msra.mxu0 %v666
        %1163 = vmatprep.subr.bf16.mxu0 0
        %1164 = vmatpush1.bf16.msra.mxu0 %v667
        %1165 = vmatprep.subr.bf16.mxu0 0
        %1166 = vmatpush1.bf16.msra.mxu0 %v668
        %1167 = vmatprep.subr.bf16.mxu0 0
        %1168 = vmatpush1.bf16.msra.mxu0 %v669
        %1169 = vmatprep.subr.bf16.mxu0 0
        %1170 = vmatpush1.bf16.msra.mxu0 %v670
        %1171 = vmatprep.subr.bf16.mxu0 0
        %1172 = vmatpush1.bf16.msra.mxu0 %v671
        %1173 = vmatprep.subr.bf16.mxu0 0
        %1174 = vmatpush1.bf16.msra.mxu0 %v672
        %1175 = vmatprep.subr.bf16.mxu0 0
        %1176 = vmatpush1.bf16.msra.mxu0 0
        %1177 = vmatprep.subr.bf16.mxu0 0
        %1178 = vmatpush1.bf16.msra.mxu0 0
        %1179 = vmatprep.subr.bf16.mxu0 0
        %1180 = vmatpush1.bf16.msra.mxu0 0
        %1181 = vmatprep.subr.bf16.mxu0 0
        %1182 = vmatpush1.bf16.msra.mxu0 0
        %1183 = vmatprep.subr.bf16.mxu0 0
        %1184 = vmatpush1.bf16.msra.mxu0 0
        %1185 = vmatprep.subr.bf16.mxu0 0
        %1186 = vmatpush1.bf16.msra.mxu0 0
        %1187 = vmatprep.subr.bf16.mxu0 0
        %1188 = vmatpush1.bf16.msra.mxu0 0
        %1189 = vmatprep.subr.bf16.mxu0 0
        %1190 = vmatpush1.bf16.msra.mxu0 0
        %1191 = vmatprep.mubr.bf16.mxu0 0
        %1192 = vmatmul.mubr.bf16.gmra.mrb[0].mxu0 %v1158
        %v1193 = vpop.f32.mrb[0].mxu0
        %v1194 = vadd.f32 %v574, %v1193
        %v1195 = vpop.f32.mrb[0].mxu0
        %v1196 = vpop.f32.mrb[0].mxu0
        %v1197 = vadd.f32 %v578, %v1196
        %v1198 = vpop.f32.mrb[0].mxu0
        %1199 = vdwg.mxu0
        %v1200 = vmax.f32 %v1194, 0.0
        %v1201 = vmax.f32 %v1197, 0.0
        %v1202 = vmax.f32 %v1154, %v1200
        %v1203 = vmax.f32 %v1155, %v1201
        %v1204 = vmax.f32 %v582, 0.0
        %v1205 = vmax.f32 %v586, 0.0
        %v1206 = vpack.c.bf16 %v1205, %v1204
        %1207 = vmatprep.subr.bf16.mxu0 0
        %1208 = vmatpush1.bf16.msra.mxu0 %v665
        %1209 = vmatprep.subr.bf16.mxu0 0
        %1210 = vmatpush1.bf16.msra.mxu0 %v666
        %1211 = vmatprep.subr.bf16.mxu0 0
        %1212 = vmatpush1.bf16.msra.mxu0 %v667
        %1213 = vmatprep.subr.bf16.mxu0 0
        %1214 = vmatpush1.bf16.msra.mxu0 %v668
        %1215 = vmatprep.subr.bf16.mxu0 0
        %1216 = vmatpush1.bf16.msra.mxu0 %v669
        %1217 = vmatprep.subr.bf16.mxu0 0
        %1218 = vmatpush1.bf16.msra.mxu0 %v670
        %1219 = vmatprep.subr.bf16.mxu0 0
        %1220 = vmatpush1.bf16.msra.mxu0 %v671
        %1221 = vmatprep.subr.bf16.mxu0 0
        %1222 = vmatpush1.bf16.msra.mxu0 %v672
        %1223 = vmatprep.subr.bf16.mxu0 0
        %1224 = vmatpush1.bf16.msra.mxu0 0
        %1225 = vmatprep.subr.bf16.mxu0 0
        %1226 = vmatpush1.bf16.msra.mxu0 0
        %1227 = vmatprep.subr.bf16.mxu0 0
        %1228 = vmatpush1.bf16.msra.mxu0 0
        %1229 = vmatprep.subr.bf16.mxu0 0
        %1230 = vmatpush1.bf16.msra.mxu0 0
        %1231 = vmatprep.subr.bf16.mxu0 0
        %1232 = vmatpush1.bf16.msra.mxu0 0
        %1233 = vmatprep.subr.bf16.mxu0 0
        %1234 = vmatpush1.bf16.msra.mxu0 0
        %1235 = vmatprep.subr.bf16.mxu0 0
        %1236 = vmatpush1.bf16.msra.mxu0 0
        %1237 = vmatprep.subr.bf16.mxu0 0
        %1238 = vmatpush1.bf16.msra.mxu0 0
        %1239 = vmatprep.mubr.bf16.mxu0 0
        %1240 = vmatmul.mubr.bf16.gmra.mrb[0].mxu0 %v1206
        %v1241 = vpop.f32.mrb[0].mxu0
        %v1242 = vadd.f32 %v584, %v1241
        %v1243 = vpop.f32.mrb[0].mxu0
        %v1244 = vpop.f32.mrb[0].mxu0
        %v1245 = vadd.f32 %v588, %v1244
        %v1246 = vpop.f32.mrb[0].mxu0
        %1247 = vdwg.mxu0
        %v1248 = vmax.f32 %v1242, 0.0
        %v1249 = vmax.f32 %v1245, 0.0
        %v1250 = vmax.f32 %v1202, %v1248
        %v1251 = vmax.f32 %v1203, %v1249
        %v1252 = vmax.f32 %v592, 0.0
        %v1253 = vmax.f32 %v596, 0.0
        %v1254 = vpack.c.bf16 %v1253, %v1252
        %1255 = vmatprep.subr.bf16.mxu0 0
        %1256 = vmatpush1.bf16.msra.mxu0 %v665
        %1257 = vmatprep.subr.bf16.mxu0 0
        %1258 = vmatpush1.bf16.msra.mxu0 %v666
        %1259 = vmatprep.subr.bf16.mxu0 0
        %1260 = vmatpush1.bf16.msra.mxu0 %v667
        %1261 = vmatprep.subr.bf16.mxu0 0
        %1262 = vmatpush1.bf16.msra.mxu0 %v668
        %1263 = vmatprep.subr.bf16.mxu0 0
        %1264 = vmatpush1.bf16.msra.mxu0 %v669
        %1265 = vmatprep.subr.bf16.mxu0 0
        %1266 = vmatpush1.bf16.msra.mxu0 %v670
        %1267 = vmatprep.subr.bf16.mxu0 0
        %1268 = vmatpush1.bf16.msra.mxu0 %v671
        %1269 = vmatprep.subr.bf16.mxu0 0
        %1270 = vmatpush1.bf16.msra.mxu0 %v672
        %1271 = vmatprep.subr.bf16.mxu0 0
        %1272 = vmatpush1.bf16.msra.mxu0 0
        %1273 = vmatprep.subr.bf16.mxu0 0
        %1274 = vmatpush1.bf16.msra.mxu0 0
        %1275 = vmatprep.subr.bf16.mxu0 0
        %1276 = vmatpush1.bf16.msra.mxu0 0
        %1277 = vmatprep.subr.bf16.mxu0 0
        %1278 = vmatpush1.bf16.msra.mxu0 0
        %1279 = vmatprep.subr.bf16.mxu0 0
        %1280 = vmatpush1.bf16.msra.mxu0 0
        %1281 = vmatprep.subr.bf16.mxu0 0
        %1282 = vmatpush1.bf16.msra.mxu0 0
        %1283 = vmatprep.subr.bf16.mxu0 0
        %1284 = vmatpush1.bf16.msra.mxu0 0
        %1285 = vmatprep.subr.bf16.mxu0 0
        %1286 = vmatpush1.bf16.msra.mxu0 0
        %1287 = vmatprep.mubr.bf16.mxu0 0
        %1288 = vmatmul.mubr.bf16.gmra.mrb[0].mxu0 %v1254
        %v1289 = vpop.f32.mrb[0].mxu0
        %v1290 = vadd.f32 %v594, %v1289
        %v1291 = vpop.f32.mrb[0].mxu0
        %v1292 = vpop.f32.mrb[0].mxu0
        %v1293 = vadd.f32 %v598, %v1292
        %v1294 = vpop.f32.mrb[0].mxu0
        %1295 = vdwg.mxu0
        %v1296 = vmax.f32 %v1290, 0.0
        %v1297 = vmax.f32 %v1293, 0.0
        %v1298 = vmax.f32 %v1250, %v1296
        %v1299 = vmax.f32 %v1251, %v1297
        %v1300 = vmax.f32 %v602, 0.0
        %v1301 = vmax.f32 %v606, 0.0
        %v1302 = vpack.c.bf16 %v1301, %v1300
        %1303 = vmatprep.subr.bf16.mxu0 0
        %1304 = vmatpush1.bf16.msra.mxu0 %v665
        %1305 = vmatprep.subr.bf16.mxu0 0
        %1306 = vmatpush1.bf16.msra.mxu0 %v666
        %1307 = vmatprep.subr.bf16.mxu0 0
        %1308 = vmatpush1.bf16.msra.mxu0 %v667
        %1309 = vmatprep.subr.bf16.mxu0 0
        %1310 = vmatpush1.bf16.msra.mxu0 %v668
        %1311 = vmatprep.subr.bf16.mxu0 0
        %1312 = vmatpush1.bf16.msra.mxu0 %v669
        %1313 = vmatprep.subr.bf16.mxu0 0
        %1314 = vmatpush1.bf16.msra.mxu0 %v670
        %1315 = vmatprep.subr.bf16.mxu0 0
        %1316 = vmatpush1.bf16.msra.mxu0 %v671
        %1317 = vmatprep.subr.bf16.mxu0 0
        %1318 = vmatpush1.bf16.msra.mxu0 %v672
        %1319 = vmatprep.subr.bf16.mxu0 0
        %1320 = vmatpush1.bf16.msra.mxu0 0
        %1321 = vmatprep.subr.bf16.mxu0 0
        %1322 = vmatpush1.bf16.msra.mxu0 0
        %1323 = vmatprep.subr.bf16.mxu0 0
        %1324 = vmatpush1.bf16.msra.mxu0 0
        %1325 = vmatprep.subr.bf16.mxu0 0
        %1326 = vmatpush1.bf16.msra.mxu0 0
        %1327 = vmatprep.subr.bf16.mxu0 0
        %1328 = vmatpush1.bf16.msra.mxu0 0
        %1329 = vmatprep.subr.bf16.mxu0 0
        %1330 = vmatpush1.bf16.msra.mxu0 0
        %1331 = vmatprep.subr.bf16.mxu0 0
        %1332 = vmatpush1.bf16.msra.mxu0 0
        %1333 = vmatprep.subr.bf16.mxu0 0
        %1334 = vmatpush1.bf16.msra.mxu0 0
        %1335 = vmatprep.mubr.bf16.mxu0 0
        %1336 = vmatmul.mubr.bf16.gmra.mrb[0].mxu0 %v1302
        %v1337 = vpop.f32.mrb[0].mxu0
        %v1338 = vadd.f32 %v604, %v1337
        %v1339 = vpop.f32.mrb[0].mxu0
        %v1340 = vpop.f32.mrb[0].mxu0
        %v1341 = vadd.f32 %v608, %v1340
        %v1342 = vpop.f32.mrb[0].mxu0
        %1343 = vdwg.mxu0
        %v1344 = vmax.f32 %v1338, 0.0
        %v1345 = vmax.f32 %v1341, 0.0
        %v1346 = vmax.f32 %v1298, %v1344
        %v1347 = vmax.f32 %v1299, %v1345
        %v1348 = vmax.f32 %v612, 0.0
        %v1349 = vmax.f32 %v616, 0.0
        %v1350 = vpack.c.bf16 %v1349, %v1348
        %1351 = vmatprep.subr.bf16.mxu0 0
        %1352 = vmatpush1.bf16.msra.mxu0 %v665
        %1353 = vmatprep.subr.bf16.mxu0 0
        %1354 = vmatpush1.bf16.msra.mxu0 %v666
        %1355 = vmatprep.subr.bf16.mxu0 0
        %1356 = vmatpush1.bf16.msra.mxu0 %v667
        %1357 = vmatprep.subr.bf16.mxu0 0
        %1358 = vmatpush1.bf16.msra.mxu0 %v668
        %1359 = vmatprep.subr.bf16.mxu0 0
        %1360 = vmatpush1.bf16.msra.mxu0 %v669
        %1361 = vmatprep.subr.bf16.mxu0 0
        %1362 = vmatpush1.bf16.msra.mxu0 %v670
        %1363 = vmatprep.subr.bf16.mxu0 0
        %1364 = vmatpush1.bf16.msra.mxu0 %v671
        %1365 = vmatprep.subr.bf16.mxu0 0
        %1366 = vmatpush1.bf16.msra.mxu0 %v672
        %1367 = vmatprep.subr.bf16.mxu0 0
        %1368 = vmatpush1.bf16.msra.mxu0 0
        %1369 = vmatprep.subr.bf16.mxu0 0
        %1370 = vmatpush1.bf16.msra.mxu0 0
        %1371 = vmatprep.subr.bf16.mxu0 0
        %1372 = vmatpush1.bf16.msra.mxu0 0
        %1373 = vmatprep.subr.bf16.mxu0 0
        %1374 = vmatpush1.bf16.msra.mxu0 0
        %1375 = vmatprep.subr.bf16.mxu0 0
        %1376 = vmatpush1.bf16.msra.mxu0 0
        %1377 = vmatprep.subr.bf16.mxu0 0
        %1378 = vmatpush1.bf16.msra.mxu0 0
        %1379 = vmatprep.subr.bf16.mxu0 0
        %1380 = vmatpush1.bf16.msra.mxu0 0
        %1381 = vmatprep.subr.bf16.mxu0 0
        %1382 = vmatpush1.bf16.msra.mxu0 0
        %1383 = vmatprep.mubr.bf16.mxu0 0
        %1384 = vmatmul.mubr.bf16.gmra.mrb[0].mxu0 %v1350
        %v1385 = vpop.f32.mrb[0].mxu0
        %v1386 = vadd.f32 %v614, %v1385
        %v1387 = vpop.f32.mrb[0].mxu0
        %v1388 = vpop.f32.mrb[0].mxu0
        %v1389 = vadd.f32 %v618, %v1388
        %v1390 = vpop.f32.mrb[0].mxu0
        %1391 = vdwg.mxu0
        %v1392 = vmax.f32 %v1386, 0.0
        %v1393 = vmax.f32 %v1389, 0.0
        %v1394 = vmax.f32 %v1346, %v1392
        %v1395 = vmax.f32 %v1347, %v1393
        %v1396 = vmax.f32 %v622, 0.0
        %v1397 = vmax.f32 %v626, 0.0
        %v1398 = vpack.c.bf16 %v1397, %v1396
        %1399 = vmatprep.subr.bf16.mxu0 0
        %1400 = vmatpush1.bf16.msra.mxu0 %v665
        %1401 = vmatprep.subr.bf16.mxu0 0
        %1402 = vmatpush1.bf16.msra.mxu0 %v666
        %1403 = vmatprep.subr.bf16.mxu0 0
        %1404 = vmatpush1.bf16.msra.mxu0 %v667
        %1405 = vmatprep.subr.bf16.mxu0 0
        %1406 = vmatpush1.bf16.msra.mxu0 %v668
        %1407 = vmatprep.subr.bf16.mxu0 0
        %1408 = vmatpush1.bf16.msra.mxu0 %v669
        %1409 = vmatprep.subr.bf16.mxu0 0
        %1410 = vmatpush1.bf16.msra.mxu0 %v670
        %1411 = vmatprep.subr.bf16.mxu0 0
        %1412 = vmatpush1.bf16.msra.mxu0 %v671
        %1413 = vmatprep.subr.bf16.mxu0 0
        %1414 = vmatpush1.bf16.msra.mxu0 %v672
        %1415 = vmatprep.subr.bf16.mxu0 0
        %1416 = vmatpush1.bf16.msra.mxu0 0
        %1417 = vmatprep.subr.bf16.mxu0 0
        %1418 = vmatpush1.bf16.msra.mxu0 0
        %1419 = vmatprep.subr.bf16.mxu0 0
        %1420 = vmatpush1.bf16.msra.mxu0 0
        %1421 = vmatprep.subr.bf16.mxu0 0
        %1422 = vmatpush1.bf16.msra.mxu0 0
        %1423 = vmatprep.subr.bf16.mxu0 0
        %1424 = vmatpush1.bf16.msra.mxu0 0
        %1425 = vmatprep.subr.bf16.mxu0 0
        %1426 = vmatpush1.bf16.msra.mxu0 0
        %1427 = vmatprep.subr.bf16.mxu0 0
        %1428 = vmatpush1.bf16.msra.mxu0 0
        %1429 = vmatprep.subr.bf16.mxu0 0
        %1430 = vmatpush1.bf16.msra.mxu0 0
        %1431 = vmatprep.mubr.bf16.mxu0 0
        %1432 = vmatmul.mubr.bf16.gmra.mrb[0].mxu0 %v1398
        %v1433 = vpop.f32.mrb[0].mxu0
        %v1434 = vadd.f32 %v624, %v1433
        %v1435 = vpop.f32.mrb[0].mxu0
        %v1436 = vpop.f32.mrb[0].mxu0
        %v1437 = vadd.f32 %v628, %v1436
        %v1438 = vpop.f32.mrb[0].mxu0
        %1439 = vdwg.mxu0
        %v1440 = vmax.f32 %v1434, 0.0
        %v1441 = vmax.f32 %v1437, 0.0
        %v1442 = vmax.f32 %v1394, %v1440
        %v1443 = vmax.f32 %v1395, %v1441
        %1444 = vst [vmem:[%s215] sm:$0xff] %v1442
        %1445 = vst [vmem:[%s215 + $0x8] sm:$0xff] %v1443
        %s1446 = sand.u32 %s131, 1
        %s1447 = scalar_lea.sflag [#allocation3], %s1446
        %s1448 = sand.u32 %s131, 1
        %s1449 = smul.addr %s1448, 16
        %s1450 = scalar_lea.vmem [#allocation2], %s1449
        // Predicated region
        $region37: #{tpu_custom_call.1} parent=35 // pred_check
          %p1451 = pneg %p141
        $region38: #{tpu_custom_call.1} parent=35 // pred_check_branch
          %1453 = sbr.rel (%p1451) target = $region40
        $region39: #{tpu_custom_call.1} parent=35 // pred_region
          %s1454 = smul.u32 2, %s23
          %s1456 = ssub.s32 256, 256
          %1457 = vsyncadd %s1447, %s1456
          %s1458 = smul.addr %s22, 2
          %s1459 = sadd.s32 %s1454, %s1458
          %s1460 = smul.addr %s1459, 128
          %s1461 = scalar_lea.hbm %s4, %s1460
          %s1462 = sshll.u32 %s1450, 4
          %s1463 = int_to_ptr.vmem [resolvable:$true] %s1462
          %1468 = dma.vmem_to_hbm [thread:$0]  %s1463, 256, %s1461, %s1447, 128, 128, 8
        $region40: #{tpu_custom_call.1} parent=35 // pred_fallthru
          _
      $region36: #{tpu_custom_call.1} parent=5 // pred_fallthru
        _
      %p1469 = scmp.le.s32.totalorder 2, %s13
      // Predicated region
      $region41: #{tpu_custom_call.1} parent=5 // pred_check
        %p1470 = pneg %p1469
      $region42: #{tpu_custom_call.1} parent=5 // pred_check_branch
        %1472 = sbr.rel (%p1470) target = $region44
      $region43: #{tpu_custom_call.1} parent=5 // pred_region
        %s1473 = ssub.s32 %s13, 2
        // Predicated region
        $region45: #{tpu_custom_call.1} parent=43 // pred_check
          %p1474 = pneg %p147
        $region46: #{tpu_custom_call.1} parent=43 // pred_check_branch
          %1476 = sbr.rel (%p1474) target = $region48
        $region47: #{tpu_custom_call.1} parent=43 // pred_region
          %s1477 = sand.u32 %s132, 1
          %s1478 = scalar_lea.sflag [#allocation3], %s1477
          %s1479 = sand.u32 %s132, 1
          %s1480 = smul.addr %s1479, 16
          %s1481 = scalar_lea.vmem [#allocation2], %s1480
          %1482 = dma.done %s1478, 256
        $region48: #{tpu_custom_call.1} parent=43 // pred_fallthru
          _
      $region44: #{tpu_custom_call.1} parent=5 // pred_fallthru
        _
    $region6: #{tpu_custom_call.1} parent=1 // loop_footer
      %s17 = sadd.s32 1, %s13
    $region7: #{tpu_custom_call.1} parent=1 // loop_footer_branch
      %12 = sbr.rel target = $region3
    $region8: #{tpu_custom_call.1} parent=1 // loop_exit
      _
    %1483 = vsyncpa [#allocation3], 1
    %s1484 = scalar_lea.sflag [#allocation3], 1
    %1485 = vsyncpa %s1484, 1

</llo_original>
